<compile_context>
chip_gen: v7x
topology: tpu7x:2x2x1
jax: 0.10.0
libtpu: 0.0.40
codegen_flags: <defaults>
</compile_context>

<pallas_src>
import functools

import jax
import jax.numpy as jnp
from jax import lax
from jax.experimental import pallas as pl
from jax.experimental.pallas import tpu as pltpu

K = 7          # conv kernel size
P = K // 2     # zero padding


def _pick_c_tile(C, H, W, max_tile_bytes=4 * 1024 * 1024):
    """Largest divisor of C whose (TC, H, W) f32 tile stays under max_tile_bytes."""
    cap = max(1, min(C, max_tile_bytes // max(1, H * W * 4)))
    for t in range(cap, 0, -1):
        if C % t == 0:
            return t
    return 1


def spatial_attention_kernel(w_ref, x_ref, o_ref, sum_ref, max_ref, pad_ref,
                             *, C, TC, H, W):
    # w_ref  : SMEM (2*K*K,) f32       -- conv weight, flattened [c, kh, kw]
    # x_ref  : VMEM (TC, H, W)         -- one channel tile of one image
    # o_ref  : VMEM (H, W)             -- output map (batch / out-ch squeezed)
    # sum_ref: VMEM (H, W) f32         -- running channel sum (per-core scratch)
    # max_ref: VMEM (H, W) f32         -- running channel max (per-core scratch)
    # pad_ref: VMEM (2, H+2P, W+2P) f32-- zero-padded [avg, max] planes
    c_idx = pl.program_id(1)

    @pl.when(c_idx == 0)
    def _init():
        sum_ref[...] = jnp.zeros_like(sum_ref)
        max_ref[...] = jnp.full_like(max_ref, -jnp.inf)

    # Single sweep over the channel tile: one load per channel feeds both the
    # running sum and the running max (no full-tile live value).
    x0 = x_ref[0].astype(jnp.float32)

    def body(c, carry):
        s, m = carry
        xc = x_ref[c].astype(jnp.float32)
        return s + xc, jnp.maximum(m, xc)

    unroll = max(1, min(TC - 1, 8))
    tile_sum, tile_max = lax.fori_loop(1, TC, body, (x0, x0), unroll=unroll)

    sum_ref[...] += tile_sum
    max_ref[...] = jnp.maximum(max_ref[...], tile_max)

    # Finalize: padded 7x7 conv over [mean, max] + sigmoid, only on last C step.
    @pl.when(c_idx == pl.num_programs(1) - 1)
    def _finalize():
        avg = sum_ref[...] * jnp.float32(1.0 / C)
        mx = max_ref[...]

        # Zero only the halo border; the interior is fully overwritten below.
        zrow = jnp.zeros((P, W + 2 * P), jnp.float32)
        zcol = jnp.zeros((H, P), jnp.float32)
        for c in range(2):
            pad_ref[c, 0:P, :] = zrow
            pad_ref[c, P + H:, :] = zrow
            pad_ref[c, P:P + H, 0:P] = zcol
            pad_ref[c, P:P + H, P + W:] = zcol
        pad_ref[0, P:P + H, P:P + W] = avg
        pad_ref[1, P:P + H, P:P + W] = mx

        # 14 lane-offset reads (one per plane x kw); the 7 kh taps are
        # sublane-offset slices of each read.
        acc = jnp.zeros((H, W), jnp.float32)
        for c in range(2):
            for kw in range(K):
                col = pad_ref[c, :, kw:kw + W]          # (H + 2P, W)
                for kh in range(K):
                    w = w_ref[c * K * K + kh * K + kw]
                    acc = acc + w * col[kh:kh + H, :]

        o_ref[...] = jax.nn.sigmoid(acc).astype(o_ref.dtype)


def spatial_attention(x, conv_weight):
    """x: (B, C, H, W) float, conv_weight: (1, 2, K, K) -> (B, 1, H, W)."""
    B, C, H, W = x.shape
    TC = _pick_c_tile(C, H, W)          # channel tile (divides C, <= ~4 MiB)
    n_ct = C // TC
    w_flat = conv_weight.reshape(-1).astype(jnp.float32)   # [c, kh, kw] order

    kernel = functools.partial(spatial_attention_kernel, C=C, TC=TC, H=H, W=W)

    return pl.pallas_call(
        kernel,
        out_shape=jax.ShapeDtypeStruct((B, 1, H, W), x.dtype),
        grid_spec=pltpu.PrefetchScalarGridSpec(
            num_scalar_prefetch=1,                          # w_flat -> SMEM
            grid=(B, n_ct),                                 # channel axis last
            in_specs=[
                pl.BlockSpec((None, TC, H, W), lambda b, c, w: (b, c, 0, 0)),
            ],
            out_specs=pl.BlockSpec((None, None, H, W),
                                   lambda b, c, w: (b, 0, 0, 0)),
            scratch_shapes=[
                pltpu.VMEM((H, W), jnp.float32),                     # running sum
                pltpu.VMEM((H, W), jnp.float32),                     # running max
                pltpu.VMEM((2, H + 2 * P, W + 2 * P), jnp.float32),  # padded planes
            ],
        ),
        compiler_params=pltpu.CompilerParams(
            dimension_semantics=("parallel", "arbitrary"),
        ),
    )(w_flat, x)


def spatial_attention_ref(x, conv_weight):
    avg = jnp.mean(x, axis=1, keepdims=True)
    mx = jnp.max(x, axis=1, keepdims=True)
    xc = jnp.concatenate([avg, mx], axis=1)
    out = jax.lax.conv_general_dilated(
        xc, conv_weight, window_strides=(1, 1),
        padding=[(P, P), (P, P)],
        dimension_numbers=("NCHW", "OIHW", "NCHW"),
    )
    return jax.nn.sigmoid(out)


if __name__ == "__main__":
    key = jax.random.PRNGKey(0)
    kx, kw = jax.random.split(key)

    B, C, H, W = 2, 4, 16, 16
    x = jax.random.normal(kx, (B, C, H, W), dtype=jnp.float32)

    # Deterministic Conv2d(2, 1, 7, bias=False) weight, kaiming-uniform-like bound.
    fan_in = 2 * K * K
    bound = 1.0 / jnp.sqrt(jnp.float32(fan_in))
    conv_weight = jax.random.uniform(
        kw, (1, 2, K, K), dtype=jnp.float32, minval=-bound, maxval=bound
    )

    out = spatial_attention(x, conv_weight)
    out = jax.block_until_ready(out)

    ref = spatial_attention_ref(x, conv_weight)
    assert out.shape == (B, 1, H, W)
    assert jnp.allclose(out, ref, atol=1e-5, rtol=1e-5), "mismatch vs reference"

    print("KERNEL_OK")
</pallas_src>

<mosaic_0001>
module attributes {stable_mosaic.version = 11 : i64} {
  func.func @spatial_attention_kernel(%arg0: i32, %arg1: i32, %arg2: memref<98xf32, #tpu.memory_space<smem>>, %arg3: memref<1x4x16x16xf32, #tpu.memory_space<vmem>>, %arg4: memref<1x1x16x16xf32, #tpu.memory_space<vmem>>, %arg5: memref<16x16xf32, #tpu.memory_space<vmem>>, %arg6: memref<16x16xf32, #tpu.memory_space<vmem>>, %arg7: memref<2x22x22xf32, #tpu.memory_space<vmem>>) attributes {dimension_semantics = [#tpu.dimension_semantics<parallel>, #tpu.dimension_semantics<arbitrary>], iteration_bounds = array<i64: 2, 1>, scalar_prefetch = 1 : i64, scratch_operands = 3 : i64, tpu.core_type = #tpu.core_type<tc>, window_params = [{transform_indices = @transform_0, window_bounds = array<i64: 1, 4, 16, 16>}, {transform_indices = @transform_1, window_bounds = array<i64: 1, 1, 16, 16>}]} {
    %c0_i32 = arith.constant 0 : i32
    %0 = arith.cmpi eq, %arg1, %c0_i32 : i32
    %1 = arith.extui %0 : i1 to i32
    %c0_i32_0 = arith.constant 0 : i32
    %2 = arith.cmpi ne, %1, %c0_i32_0 : i32
    scf.if %2 {
      %cst = arith.constant 0.000000e+00 : f32
      %29 = vector.broadcast %cst : f32 to vector<16x16xf32>
      %c0_24 = arith.constant 0 : index
      %c0_25 = arith.constant 0 : index
      %30 = vector.load %arg5[%c0_24, %c0_25] : memref<16x16xf32, #tpu.memory_space<vmem>>, vector<16x16xf32>
      tpu.vector_store %arg5[%c0_24, %c0_25], %29 {strides = array<i32>} : memref<16x16xf32, #tpu.memory_space<vmem>>, vector<16x16xf32>,
      %cst_26 = arith.constant 0xFF800000 : f32
      %31 = vector.broadcast %cst_26 : f32 to vector<16x16xf32>
      %c0_27 = arith.constant 0 : index
      %c0_28 = arith.constant 0 : index
      %32 = vector.load %arg6[%c0_27, %c0_28] : memref<16x16xf32, #tpu.memory_space<vmem>>, vector<16x16xf32>
      tpu.vector_store %arg6[%c0_27, %c0_28], %31 {strides = array<i32>} : memref<16x16xf32, #tpu.memory_space<vmem>>, vector<16x16xf32>,
    } else {
    }
    %c0 = arith.constant 0 : index
    %c0_1 = arith.constant 0 : index
    %c0_2 = arith.constant 0 : index
    %c0_3 = arith.constant 0 : index
    %3 = vector.load %arg3[%c0, %c0_1, %c0_2, %c0_3] : memref<1x4x16x16xf32, #tpu.memory_space<vmem>>, vector<1x1x16x16xf32>
    %4 = vector.shape_cast %3 : vector<1x1x16x16xf32> to vector<16x16xf32>
    %c1_i32 = arith.constant 1 : i32
    %c0_4 = arith.constant 0 : index
    %5 = arith.index_cast %c1_i32 : i32 to index
    %c0_5 = arith.constant 0 : index
    %c0_6 = arith.constant 0 : index
    %6 = vector.load %arg3[%c0_4, %5, %c0_5, %c0_6] : memref<1x4x16x16xf32, #tpu.memory_space<vmem>>, vector<1x1x16x16xf32>
    %7 = vector.shape_cast %6 : vector<1x1x16x16xf32> to vector<16x16xf32>
    %8 = arith.addf %4, %7 : vector<16x16xf32>
    %9 = arith.maximumf %4, %7 : vector<16x16xf32>
    %c2_i32 = arith.constant 2 : i32
    %c0_7 = arith.constant 0 : index
    %10 = arith.index_cast %c2_i32 : i32 to index
    %c0_8 = arith.constant 0 : index
    %c0_9 = arith.constant 0 : index
    %11 = vector.load %arg3[%c0_7, %10, %c0_8, %c0_9] : memref<1x4x16x16xf32, #tpu.memory_space<vmem>>, vector<1x1x16x16xf32>
    %12 = vector.shape_cast %11 : vector<1x1x16x16xf32> to vector<16x16xf32>
    %13 = arith.addf %8, %12 : vector<16x16xf32>
    %14 = arith.maximumf %9, %12 : vector<16x16xf32>
    %c3_i32 = arith.constant 3 : i32
    %c0_10 = arith.constant 0 : index
    %15 = arith.index_cast %c3_i32 : i32 to index
    %c0_11 = arith.constant 0 : index
    %c0_12 = arith.constant 0 : index
    %16 = vector.load %arg3[%c0_10, %15, %c0_11, %c0_12] : memref<1x4x16x16xf32, #tpu.memory_space<vmem>>, vector<1x1x16x16xf32>
    %17 = vector.shape_cast %16 : vector<1x1x16x16xf32> to vector<16x16xf32>
    %18 = arith.addf %13, %17 : vector<16x16xf32>
    %19 = arith.maximumf %14, %17 : vector<16x16xf32>
    %c3_i32_13 = arith.constant 3 : i32
    %c0_14 = arith.constant 0 : index
    %c0_15 = arith.constant 0 : index
    %20 = vector.load %arg5[%c0_14, %c0_15] : memref<16x16xf32, #tpu.memory_space<vmem>>, vector<16x16xf32>
    %21 = arith.addf %20, %18 : vector<16x16xf32>
    %c0_16 = arith.constant 0 : index
    %c0_17 = arith.constant 0 : index
    %22 = vector.load %arg5[%c0_16, %c0_17] : memref<16x16xf32, #tpu.memory_space<vmem>>, vector<16x16xf32>
    tpu.vector_store %arg5[%c0_16, %c0_17], %21 {strides = array<i32>} : memref<16x16xf32, #tpu.memory_space<vmem>>, vector<16x16xf32>,
    %c0_18 = arith.constant 0 : index
    %c0_19 = arith.constant 0 : index
    %23 = vector.load %arg6[%c0_18, %c0_19] : memref<16x16xf32, #tpu.memory_space<vmem>>, vector<16x16xf32>
    %24 = arith.maximumf %23, %19 : vector<16x16xf32>
    %c0_20 = arith.constant 0 : index
    %c0_21 = arith.constant 0 : index
    %25 = vector.load %arg6[%c0_20, %c0_21] : memref<16x16xf32, #tpu.memory_space<vmem>>, vector<16x16xf32>
    tpu.vector_store %arg6[%c0_20, %c0_21], %24 {strides = array<i32>} : memref<16x16xf32, #tpu.memory_space<vmem>>, vector<16x16xf32>,
    %c0_i32_22 = arith.constant 0 : i32
    %26 = arith.cmpi eq, %arg1, %c0_i32_22 : i32
    %27 = arith.extui %26 : i1 to i32
    %c0_i32_23 = arith.constant 0 : i32
    %28 = arith.cmpi ne, %27, %c0_i32_23 : i32
    scf.if %28 {
      %c0_24 = arith.constant 0 : index
      %c0_25 = arith.constant 0 : index
      %29 = vector.load %arg5[%c0_24, %c0_25] : memref<16x16xf32, #tpu.memory_space<vmem>>, vector<16x16xf32>
      %cst = arith.constant 2.500000e-01 : f32
      %30 = vector.broadcast %cst : f32 to vector<16x16xf32>
      %31 = arith.mulf %29, %30 : vector<16x16xf32>
      %c0_26 = arith.constant 0 : index
      %c0_27 = arith.constant 0 : index
      %32 = vector.load %arg6[%c0_26, %c0_27] : memref<16x16xf32, #tpu.memory_space<vmem>>, vector<16x16xf32>
      %cst_28 = arith.constant 0.000000e+00 : f32
      %33 = vector.broadcast %cst_28 : f32 to vector<3x22xf32>
      %cst_29 = arith.constant 0.000000e+00 : f32
      %34 = vector.broadcast %cst_29 : f32 to vector<16x3xf32>
      %c0_30 = arith.constant 0 : index
      %c0_31 = arith.constant 0 : index
      %c0_32 = arith.constant 0 : index
      %35 = vector.load %arg7[%c0_30, %c0_31, %c0_32] : memref<2x22x22xf32, #tpu.memory_space<vmem>>, vector<1x3x22xf32>
      %36 = vector.shape_cast %35 : vector<1x3x22xf32> to vector<3x22xf32>
      %37 = vector.shape_cast %33 : vector<3x22xf32> to vector<1x3x22xf32>
      tpu.vector_store %arg7[%c0_30, %c0_31, %c0_32], %37 {strides = array<i32>} : memref<2x22x22xf32, #tpu.memory_space<vmem>>, vector<1x3x22xf32>,
      %c0_33 = arith.constant 0 : index
      %c19 = arith.constant 19 : index
      %c0_34 = arith.constant 0 : index
      %38 = vector.load %arg7[%c0_33, %c19, %c0_34] : memref<2x22x22xf32, #tpu.memory_space<vmem>>, vector<1x3x22xf32>
      %39 = vector.shape_cast %38 : vector<1x3x22xf32> to vector<3x22xf32>
      %40 = vector.shape_cast %33 : vector<3x22xf32> to vector<1x3x22xf32>
      tpu.vector_store %arg7[%c0_33, %c19, %c0_34], %40 {strides = array<i32>} : memref<2x22x22xf32, #tpu.memory_space<vmem>>, vector<1x3x22xf32>,
      %c0_35 = arith.constant 0 : index
      %c3 = arith.constant 3 : index
      %c0_36 = arith.constant 0 : index
      %41 = vector.load %arg7[%c0_35, %c3, %c0_36] : memref<2x22x22xf32, #tpu.memory_space<vmem>>, vector<1x16x3xf32>
      %42 = vector.shape_cast %41 : vector<1x16x3xf32> to vector<16x3xf32>
      %43 = vector.shape_cast %34 : vector<16x3xf32> to vector<1x16x3xf32>
      tpu.vector_store %arg7[%c0_35, %c3, %c0_36], %43 {strides = array<i32>} : memref<2x22x22xf32, #tpu.memory_space<vmem>>, vector<1x16x3xf32>,
      %c0_37 = arith.constant 0 : index
      %c3_38 = arith.constant 3 : index
      %c19_39 = arith.constant 19 : index
      %44 = vector.load %arg7[%c0_37, %c3_38, %c19_39] : memref<2x22x22xf32, #tpu.memory_space<vmem>>, vector<1x16x3xf32>
      %45 = vector.shape_cast %44 : vector<1x16x3xf32> to vector<16x3xf32>
      %46 = vector.shape_cast %34 : vector<16x3xf32> to vector<1x16x3xf32>
      tpu.vector_store %arg7[%c0_37, %c3_38, %c19_39], %46 {strides = array<i32>} : memref<2x22x22xf32, #tpu.memory_space<vmem>>, vector<1x16x3xf32>,
      %c1 = arith.constant 1 : index
      %c0_40 = arith.constant 0 : index
      %c0_41 = arith.constant 0 : index
      %47 = vector.load %arg7[%c1, %c0_40, %c0_41] : memref<2x22x22xf32, #tpu.memory_space<vmem>>, vector<1x3x22xf32>
      %48 = vector.shape_cast %47 : vector<1x3x22xf32> to vector<3x22xf32>
      %49 = vector.shape_cast %33 : vector<3x22xf32> to vector<1x3x22xf32>
      tpu.vector_store %arg7[%c1, %c0_40, %c0_41], %49 {strides = array<i32>} : memref<2x22x22xf32, #tpu.memory_space<vmem>>, vector<1x3x22xf32>,
      %c1_42 = arith.constant 1 : index
      %c19_43 = arith.constant 19 : index
      %c0_44 = arith.constant 0 : index
      %50 = vector.load %arg7[%c1_42, %c19_43, %c0_44] : memref<2x22x22xf32, #tpu.memory_space<vmem>>, vector<1x3x22xf32>
      %51 = vector.shape_cast %50 : vector<1x3x22xf32> to vector<3x22xf32>
      %52 = vector.shape_cast %33 : vector<3x22xf32> to vector<1x3x22xf32>
      tpu.vector_store %arg7[%c1_42, %c19_43, %c0_44], %52 {strides = array<i32>} : memref<2x22x22xf32, #tpu.memory_space<vmem>>, vector<1x3x22xf32>,
      %c1_45 = arith.constant 1 : index
      %c3_46 = arith.constant 3 : index
      %c0_47 = arith.constant 0 : index
      %53 = vector.load %arg7[%c1_45, %c3_46, %c0_47] : memref<2x22x22xf32, #tpu.memory_space<vmem>>, vector<1x16x3xf32>
      %54 = vector.shape_cast %53 : vector<1x16x3xf32> to vector<16x3xf32>
      %55 = vector.shape_cast %34 : vector<16x3xf32> to vector<1x16x3xf32>
      tpu.vector_store %arg7[%c1_45, %c3_46, %c0_47], %55 {strides = array<i32>} : memref<2x22x22xf32, #tpu.memory_space<vmem>>, vector<1x16x3xf32>,
      %c1_48 = arith.constant 1 : index
      %c3_49 = arith.constant 3 : index
      %c19_50 = arith.constant 19 : index
      %56 = vector.load %arg7[%c1_48, %c3_49, %c19_50] : memref<2x22x22xf32, #tpu.memory_space<vmem>>, vector<1x16x3xf32>
      %57 = vector.shape_cast %56 : vector<1x16x3xf32> to vector<16x3xf32>
      %58 = vector.shape_cast %34 : vector<16x3xf32> to vector<1x16x3xf32>
      tpu.vector_store %arg7[%c1_48, %c3_49, %c19_50], %58 {strides = array<i32>} : memref<2x22x22xf32, #tpu.memory_space<vmem>>, vector<1x16x3xf32>,
      %c0_51 = arith.constant 0 : index
      %c3_52 = arith.constant 3 : index
      %c3_53 = arith.constant 3 : index
      %59 = vector.load %arg7[%c0_51, %c3_52, %c3_53] : memref<2x22x22xf32, #tpu.memory_space<vmem>>, vector<1x16x16xf32>
      %60 = vector.shape_cast %59 : vector<1x16x16xf32> to vector<16x16xf32>
      %61 = vector.shape_cast %31 : vector<16x16xf32> to vector<1x16x16xf32>
      tpu.vector_store %arg7[%c0_51, %c3_52, %c3_53], %61 {strides = array<i32>} : memref<2x22x22xf32, #tpu.memory_space<vmem>>, vector<1x16x16xf32>,
      %c1_54 = arith.constant 1 : index
      %c3_55 = arith.constant 3 : index
      %c3_56 = arith.constant 3 : index
      %62 = vector.load %arg7[%c1_54, %c3_55, %c3_56] : memref<2x22x22xf32, #tpu.memory_space<vmem>>, vector<1x16x16xf32>
      %63 = vector.shape_cast %62 : vector<1x16x16xf32> to vector<16x16xf32>
      %64 = vector.shape_cast %32 : vector<16x16xf32> to vector<1x16x16xf32>
      tpu.vector_store %arg7[%c1_54, %c3_55, %c3_56], %64 {strides = array<i32>} : memref<2x22x22xf32, #tpu.memory_space<vmem>>, vector<1x16x16xf32>,
      %cst_57 = arith.constant 0.000000e+00 : f32
      %65 = vector.broadcast %cst_57 : f32 to vector<16x16xf32>
      %c0_58 = arith.constant 0 : index
      %c0_59 = arith.constant 0 : index
      %c0_60 = arith.constant 0 : index
      %66 = vector.load %arg7[%c0_58, %c0_59, %c0_60] : memref<2x22x22xf32, #tpu.memory_space<vmem>>, vector<1x22x16xf32>
      %67 = vector.shape_cast %66 : vector<1x22x16xf32> to vector<22x16xf32>
      %c0_61 = arith.constant 0 : index
      %68 = memref.load %arg2[%c0_61] : memref<98xf32, #tpu.memory_space<smem>>
      %69 = vector.extract_strided_slice %67 {offsets = [0, 0], sizes = [16, 16], strides = [1, 1]} : vector<22x16xf32> to vector<16x16xf32>
      %70 = vector.broadcast %68 : f32 to vector<16x16xf32>
      %71 = arith.mulf %70, %69 : vector<16x16xf32>
      %72 = arith.addf %65, %71 : vector<16x16xf32>
      %c7 = arith.constant 7 : index
      %73 = memref.load %arg2[%c7] : memref<98xf32, #tpu.memory_space<smem>>
      %74 = vector.extract_strided_slice %67 {offsets = [1, 0], sizes = [16, 16], strides = [1, 1]} : vector<22x16xf32> to vector<16x16xf32>
      %75 = vector.broadcast %73 : f32 to vector<16x16xf32>
      %76 = arith.mulf %75, %74 : vector<16x16xf32>
      %77 = arith.addf %72, %76 : vector<16x16xf32>
      %c14 = arith.constant 14 : index
      %78 = memref.load %arg2[%c14] : memref<98xf32, #tpu.memory_space<smem>>
      %79 = vector.extract_strided_slice %67 {offsets = [2, 0], sizes = [16, 16], strides = [1, 1]} : vector<22x16xf32> to vector<16x16xf32>
      %80 = vector.broadcast %78 : f32 to vector<16x16xf32>
      %81 = arith.mulf %80, %79 : vector<16x16xf32>
      %82 = arith.addf %77, %81 : vector<16x16xf32>
      %c21 = arith.constant 21 : index
      %83 = memref.load %arg2[%c21] : memref<98xf32, #tpu.memory_space<smem>>
      %84 = vector.extract_strided_slice %67 {offsets = [3, 0], sizes = [16, 16], strides = [1, 1]} : vector<22x16xf32> to vector<16x16xf32>
      %85 = vector.broadcast %83 : f32 to vector<16x16xf32>
      %86 = arith.mulf %85, %84 : vector<16x16xf32>
      %87 = arith.addf %82, %86 : vector<16x16xf32>
      %c28 = arith.constant 28 : index
      %88 = memref.load %arg2[%c28] : memref<98xf32, #tpu.memory_space<smem>>
      %89 = vector.extract_strided_slice %67 {offsets = [4, 0], sizes = [16, 16], strides = [1, 1]} : vector<22x16xf32> to vector<16x16xf32>
      %90 = vector.broadcast %88 : f32 to vector<16x16xf32>
      %91 = arith.mulf %90, %89 : vector<16x16xf32>
      %92 = arith.addf %87, %91 : vector<16x16xf32>
      %c35 = arith.constant 35 : index
      %93 = memref.load %arg2[%c35] : memref<98xf32, #tpu.memory_space<smem>>
      %94 = vector.extract_strided_slice %67 {offsets = [5, 0], sizes = [16, 16], strides = [1, 1]} : vector<22x16xf32> to vector<16x16xf32>
      %95 = vector.broadcast %93 : f32 to vector<16x16xf32>
      %96 = arith.mulf %95, %94 : vector<16x16xf32>
      %97 = arith.addf %92, %96 : vector<16x16xf32>
      %c42 = arith.constant 42 : index
      %98 = memref.load %arg2[%c42] : memref<98xf32, #tpu.memory_space<smem>>
      %99 = vector.extract_strided_slice %67 {offsets = [6, 0], sizes = [16, 16], strides = [1, 1]} : vector<22x16xf32> to vector<16x16xf32>
      %100 = vector.broadcast %98 : f32 to vector<16x16xf32>
      %101 = arith.mulf %100, %99 : vector<16x16xf32>
      %102 = arith.addf %97, %101 : vector<16x16xf32>
      %c0_62 = arith.constant 0 : index
      %c0_63 = arith.constant 0 : index
      %c1_64 = arith.constant 1 : index
      %103 = vector.load %arg7[%c0_62, %c0_63, %c1_64] : memref<2x22x22xf32, #tpu.memory_space<vmem>>, vector<1x22x16xf32>
      %104 = vector.shape_cast %103 : vector<1x22x16xf32> to vector<22x16xf32>
      %c1_65 = arith.constant 1 : index
      %105 = memref.load %arg2[%c1_65] : memref<98xf32, #tpu.memory_space<smem>>
      %106 = vector.extract_strided_slice %104 {offsets = [0, 0], sizes = [16, 16], strides = [1, 1]} : vector<22x16xf32> to vector<16x16xf32>
      %107 = vector.broadcast %105 : f32 to vector<16x16xf32>
      %108 = arith.mulf %107, %106 : vector<16x16xf32>
      %109 = arith.addf %102, %108 : vector<16x16xf32>
      %c8 = arith.constant 8 : index
      %110 = memref.load %arg2[%c8] : memref<98xf32, #tpu.memory_space<smem>>
      %111 = vector.extract_strided_slice %104 {offsets = [1, 0], sizes = [16, 16], strides = [1, 1]} : vector<22x16xf32> to vector<16x16xf32>
      %112 = vector.broadcast %110 : f32 to vector<16x16xf32>
      %113 = arith.mulf %112, %111 : vector<16x16xf32>
      %114 = arith.addf %109, %113 : vector<16x16xf32>
      %c15 = arith.constant 15 : index
      %115 = memref.load %arg2[%c15] : memref<98xf32, #tpu.memory_space<smem>>
      %116 = vector.extract_strided_slice %104 {offsets = [2, 0], sizes = [16, 16], strides = [1, 1]} : vector<22x16xf32> to vector<16x16xf32>
      %117 = vector.broadcast %115 : f32 to vector<16x16xf32>
      %118 = arith.mulf %117, %116 : vector<16x16xf32>
      %119 = arith.addf %114, %118 : vector<16x16xf32>
      %c22 = arith.constant 22 : index
      %120 = memref.load %arg2[%c22] : memref<98xf32, #tpu.memory_space<smem>>
      %121 = vector.extract_strided_slice %104 {offsets = [3, 0], sizes = [16, 16], strides = [1, 1]} : vector<22x16xf32> to vector<16x16xf32>
      %122 = vector.broadcast %120 : f32 to vector<16x16xf32>
      %123 = arith.mulf %122, %121 : vector<16x16xf32>
      %124 = arith.addf %119, %123 : vector<16x16xf32>
      %c29 = arith.constant 29 : index
      %125 = memref.load %arg2[%c29] : memref<98xf32, #tpu.memory_space<smem>>
      %126 = vector.extract_strided_slice %104 {offsets = [4, 0], sizes = [16, 16], strides = [1, 1]} : vector<22x16xf32> to vector<16x16xf32>
      %127 = vector.broadcast %125 : f32 to vector<16x16xf32>
      %128 = arith.mulf %127, %126 : vector<16x16xf32>
      %129 = arith.addf %124, %128 : vector<16x16xf32>
      %c36 = arith.constant 36 : index
      %130 = memref.load %arg2[%c36] : memref<98xf32, #tpu.memory_space<smem>>
      %131 = vector.extract_strided_slice %104 {offsets = [5, 0], sizes = [16, 16], strides = [1, 1]} : vector<22x16xf32> to vector<16x16xf32>
      %132 = vector.broadcast %130 : f32 to vector<16x16xf32>
      %133 = arith.mulf %132, %131 : vector<16x16xf32>
      %134 = arith.addf %129, %133 : vector<16x16xf32>
      %c43 = arith.constant 43 : index
      %135 = memref.load %arg2[%c43] : memref<98xf32, #tpu.memory_space<smem>>
      %136 = vector.extract_strided_slice %104 {offsets = [6, 0], sizes = [16, 16], strides = [1, 1]} : vector<22x16xf32> to vector<16x16xf32>
      %137 = vector.broadcast %135 : f32 to vector<16x16xf32>
      %138 = arith.mulf %137, %136 : vector<16x16xf32>
      %139 = arith.addf %134, %138 : vector<16x16xf32>
      %c0_66 = arith.constant 0 : index
      %c0_67 = arith.constant 0 : index
      %c2 = arith.constant 2 : index
      %140 = vector.load %arg7[%c0_66, %c0_67, %c2] : memref<2x22x22xf32, #tpu.memory_space<vmem>>, vector<1x22x16xf32>
      %141 = vector.shape_cast %140 : vector<1x22x16xf32> to vector<22x16xf32>
      %c2_68 = arith.constant 2 : index
      %142 = memref.load %arg2[%c2_68] : memref<98xf32, #tpu.memory_space<smem>>
      %143 = vector.extract_strided_slice %141 {offsets = [0, 0], sizes = [16, 16], strides = [1, 1]} : vector<22x16xf32> to vector<16x16xf32>
      %144 = vector.broadcast %142 : f32 to vector<16x16xf32>
      %145 = arith.mulf %144, %143 : vector<16x16xf32>
      %146 = arith.addf %139, %145 : vector<16x16xf32>
      %c9 = arith.constant 9 : index
      %147 = memref.load %arg2[%c9] : memref<98xf32, #tpu.memory_space<smem>>
      %148 = vector.extract_strided_slice %141 {offsets = [1, 0], sizes = [16, 16], strides = [1, 1]} : vector<22x16xf32> to vector<16x16xf32>
      %149 = vector.broadcast %147 : f32 to vector<16x16xf32>
      %150 = arith.mulf %149, %148 : vector<16x16xf32>
      %151 = arith.addf %146, %150 : vector<16x16xf32>
      %c16 = arith.constant 16 : index
      %152 = memref.load %arg2[%c16] : memref<98xf32, #tpu.memory_space<smem>>
      %153 = vector.extract_strided_slice %141 {offsets = [2, 0], sizes = [16, 16], strides = [1, 1]} : vector<22x16xf32> to vector<16x16xf32>
      %154 = vector.broadcast %152 : f32 to vector<16x16xf32>
      %155 = arith.mulf %154, %153 : vector<16x16xf32>
      %156 = arith.addf %151, %155 : vector<16x16xf32>
      %c23 = arith.constant 23 : index
      %157 = memref.load %arg2[%c23] : memref<98xf32, #tpu.memory_space<smem>>
      %158 = vector.extract_strided_slice %141 {offsets = [3, 0], sizes = [16, 16], strides = [1, 1]} : vector<22x16xf32> to vector<16x16xf32>
      %159 = vector.broadcast %157 : f32 to vector<16x16xf32>
      %160 = arith.mulf %159, %158 : vector<16x16xf32>
      %161 = arith.addf %156, %160 : vector<16x16xf32>
      %c30 = arith.constant 30 : index
      %162 = memref.load %arg2[%c30] : memref<98xf32, #tpu.memory_space<smem>>
      %163 = vector.extract_strided_slice %141 {offsets = [4, 0], sizes = [16, 16], strides = [1, 1]} : vector<22x16xf32> to vector<16x16xf32>
      %164 = vector.broadcast %162 : f32 to vector<16x16xf32>
      %165 = arith.mulf %164, %163 : vector<16x16xf32>
      %166 = arith.addf %161, %165 : vector<16x16xf32>
      %c37 = arith.constant 37 : index
      %167 = memref.load %arg2[%c37] : memref<98xf32, #tpu.memory_space<smem>>
      %168 = vector.extract_strided_slice %141 {offsets = [5, 0], sizes = [16, 16], strides = [1, 1]} : vector<22x16xf32> to vector<16x16xf32>
      %169 = vector.broadcast %167 : f32 to vector<16x16xf32>
      %170 = arith.mulf %169, %168 : vector<16x16xf32>
      %171 = arith.addf %166, %170 : vector<16x16xf32>
      %c44 = arith.constant 44 : index
      %172 = memref.load %arg2[%c44] : memref<98xf32, #tpu.memory_space<smem>>
      %173 = vector.extract_strided_slice %141 {offsets = [6, 0], sizes = [16, 16], strides = [1, 1]} : vector<22x16xf32> to vector<16x16xf32>
      %174 = vector.broadcast %172 : f32 to vector<16x16xf32>
      %175 = arith.mulf %174, %173 : vector<16x16xf32>
      %176 = arith.addf %171, %175 : vector<16x16xf32>
      %c0_69 = arith.constant 0 : index
      %c0_70 = arith.constant 0 : index
      %c3_71 = arith.constant 3 : index
      %177 = vector.load %arg7[%c0_69, %c0_70, %c3_71] : memref<2x22x22xf32, #tpu.memory_space<vmem>>, vector<1x22x16xf32>
      %178 = vector.shape_cast %177 : vector<1x22x16xf32> to vector<22x16xf32>
      %c3_72 = arith.constant 3 : index
      %179 = memref.load %arg2[%c3_72] : memref<98xf32, #tpu.memory_space<smem>>
      %180 = vector.extract_strided_slice %178 {offsets = [0, 0], sizes = [16, 16], strides = [1, 1]} : vector<22x16xf32> to vector<16x16xf32>
      %181 = vector.broadcast %179 : f32 to vector<16x16xf32>
      %182 = arith.mulf %181, %180 : vector<16x16xf32>
      %183 = arith.addf %176, %182 : vector<16x16xf32>
      %c10 = arith.constant 10 : index
      %184 = memref.load %arg2[%c10] : memref<98xf32, #tpu.memory_space<smem>>
      %185 = vector.extract_strided_slice %178 {offsets = [1, 0], sizes = [16, 16], strides = [1, 1]} : vector<22x16xf32> to vector<16x16xf32>
      %186 = vector.broadcast %184 : f32 to vector<16x16xf32>
      %187 = arith.mulf %186, %185 : vector<16x16xf32>
      %188 = arith.addf %183, %187 : vector<16x16xf32>
      %c17 = arith.constant 17 : index
      %189 = memref.load %arg2[%c17] : memref<98xf32, #tpu.memory_space<smem>>
      %190 = vector.extract_strided_slice %178 {offsets = [2, 0], sizes = [16, 16], strides = [1, 1]} : vector<22x16xf32> to vector<16x16xf32>
      %191 = vector.broadcast %189 : f32 to vector<16x16xf32>
      %192 = arith.mulf %191, %190 : vector<16x16xf32>
      %193 = arith.addf %188, %192 : vector<16x16xf32>
      %c24 = arith.constant 24 : index
      %194 = memref.load %arg2[%c24] : memref<98xf32, #tpu.memory_space<smem>>
      %195 = vector.extract_strided_slice %178 {offsets = [3, 0], sizes = [16, 16], strides = [1, 1]} : vector<22x16xf32> to vector<16x16xf32>
      %196 = vector.broadcast %194 : f32 to vector<16x16xf32>
      %197 = arith.mulf %196, %195 : vector<16x16xf32>
      %198 = arith.addf %193, %197 : vector<16x16xf32>
      %c31 = arith.constant 31 : index
      %199 = memref.load %arg2[%c31] : memref<98xf32, #tpu.memory_space<smem>>
      %200 = vector.extract_strided_slice %178 {offsets = [4, 0], sizes = [16, 16], strides = [1, 1]} : vector<22x16xf32> to vector<16x16xf32>
      %201 = vector.broadcast %199 : f32 to vector<16x16xf32>
      %202 = arith.mulf %201, %200 : vector<16x16xf32>
      %203 = arith.addf %198, %202 : vector<16x16xf32>
      %c38 = arith.constant 38 : index
      %204 = memref.load %arg2[%c38] : memref<98xf32, #tpu.memory_space<smem>>
      %205 = vector.extract_strided_slice %178 {offsets = [5, 0], sizes = [16, 16], strides = [1, 1]} : vector<22x16xf32> to vector<16x16xf32>
      %206 = vector.broadcast %204 : f32 to vector<16x16xf32>
      %207 = arith.mulf %206, %205 : vector<16x16xf32>
      %208 = arith.addf %203, %207 : vector<16x16xf32>
      %c45 = arith.constant 45 : index
      %209 = memref.load %arg2[%c45] : memref<98xf32, #tpu.memory_space<smem>>
      %210 = vector.extract_strided_slice %178 {offsets = [6, 0], sizes = [16, 16], strides = [1, 1]} : vector<22x16xf32> to vector<16x16xf32>
      %211 = vector.broadcast %209 : f32 to vector<16x16xf32>
      %212 = arith.mulf %211, %210 : vector<16x16xf32>
      %213 = arith.addf %208, %212 : vector<16x16xf32>
      %c0_73 = arith.constant 0 : index
      %c0_74 = arith.constant 0 : index
      %c4 = arith.constant 4 : index
      %214 = vector.load %arg7[%c0_73, %c0_74, %c4] : memref<2x22x22xf32, #tpu.memory_space<vmem>>, vector<1x22x16xf32>
      %215 = vector.shape_cast %214 : vector<1x22x16xf32> to vector<22x16xf32>
      %c4_75 = arith.constant 4 : index
      %216 = memref.load %arg2[%c4_75] : memref<98xf32, #tpu.memory_space<smem>>
      %217 = vector.extract_strided_slice %215 {offsets = [0, 0], sizes = [16, 16], strides = [1, 1]} : vector<22x16xf32> to vector<16x16xf32>
      %218 = vector.broadcast %216 : f32 to vector<16x16xf32>
      %219 = arith.mulf %218, %217 : vector<16x16xf32>
      %220 = arith.addf %213, %219 : vector<16x16xf32>
      %c11 = arith.constant 11 : index
      %221 = memref.load %arg2[%c11] : memref<98xf32, #tpu.memory_space<smem>>
      %222 = vector.extract_strided_slice %215 {offsets = [1, 0], sizes = [16, 16], strides = [1, 1]} : vector<22x16xf32> to vector<16x16xf32>
      %223 = vector.broadcast %221 : f32 to vector<16x16xf32>
      %224 = arith.mulf %223, %222 : vector<16x16xf32>
      %225 = arith.addf %220, %224 : vector<16x16xf32>
      %c18 = arith.constant 18 : index
      %226 = memref.load %arg2[%c18] : memref<98xf32, #tpu.memory_space<smem>>
      %227 = vector.extract_strided_slice %215 {offsets = [2, 0], sizes = [16, 16], strides = [1, 1]} : vector<22x16xf32> to vector<16x16xf32>
      %228 = vector.broadcast %226 : f32 to vector<16x16xf32>
      %229 = arith.mulf %228, %227 : vector<16x16xf32>
      %230 = arith.addf %225, %229 : vector<16x16xf32>
      %c25 = arith.constant 25 : index
      %231 = memref.load %arg2[%c25] : memref<98xf32, #tpu.memory_space<smem>>
      %232 = vector.extract_strided_slice %215 {offsets = [3, 0], sizes = [16, 16], strides = [1, 1]} : vector<22x16xf32> to vector<16x16xf32>
      %233 = vector.broadcast %231 : f32 to vector<16x16xf32>
      %234 = arith.mulf %233, %232 : vector<16x16xf32>
      %235 = arith.addf %230, %234 : vector<16x16xf32>
      %c32 = arith.constant 32 : index
      %236 = memref.load %arg2[%c32] : memref<98xf32, #tpu.memory_space<smem>>
      %237 = vector.extract_strided_slice %215 {offsets = [4, 0], sizes = [16, 16], strides = [1, 1]} : vector<22x16xf32> to vector<16x16xf32>
      %238 = vector.broadcast %236 : f32 to vector<16x16xf32>
      %239 = arith.mulf %238, %237 : vector<16x16xf32>
      %240 = arith.addf %235, %239 : vector<16x16xf32>
      %c39 = arith.constant 39 : index
      %241 = memref.load %arg2[%c39] : memref<98xf32, #tpu.memory_space<smem>>
      %242 = vector.extract_strided_slice %215 {offsets = [5, 0], sizes = [16, 16], strides = [1, 1]} : vector<22x16xf32> to vector<16x16xf32>
      %243 = vector.broadcast %241 : f32 to vector<16x16xf32>
      %244 = arith.mulf %243, %242 : vector<16x16xf32>
      %245 = arith.addf %240, %244 : vector<16x16xf32>
      %c46 = arith.constant 46 : index
      %246 = memref.load %arg2[%c46] : memref<98xf32, #tpu.memory_space<smem>>
      %247 = vector.extract_strided_slice %215 {offsets = [6, 0], sizes = [16, 16], strides = [1, 1]} : vector<22x16xf32> to vector<16x16xf32>
      %248 = vector.broadcast %246 : f32 to vector<16x16xf32>
      %249 = arith.mulf %248, %247 : vector<16x16xf32>
      %250 = arith.addf %245, %249 : vector<16x16xf32>
      %c0_76 = arith.constant 0 : index
      %c0_77 = arith.constant 0 : index
      %c5 = arith.constant 5 : index
      %251 = vector.load %arg7[%c0_76, %c0_77, %c5] : memref<2x22x22xf32, #tpu.memory_space<vmem>>, vector<1x22x16xf32>
      %252 = vector.shape_cast %251 : vector<1x22x16xf32> to vector<22x16xf32>
      %c5_78 = arith.constant 5 : index
      %253 = memref.load %arg2[%c5_78] : memref<98xf32, #tpu.memory_space<smem>>
      %254 = vector.extract_strided_slice %252 {offsets = [0, 0], sizes = [16, 16], strides = [1, 1]} : vector<22x16xf32> to vector<16x16xf32>
      %255 = vector.broadcast %253 : f32 to vector<16x16xf32>
      %256 = arith.mulf %255, %254 : vector<16x16xf32>
      %257 = arith.addf %250, %256 : vector<16x16xf32>
      %c12 = arith.constant 12 : index
      %258 = memref.load %arg2[%c12] : memref<98xf32, #tpu.memory_space<smem>>
      %259 = vector.extract_strided_slice %252 {offsets = [1, 0], sizes = [16, 16], strides = [1, 1]} : vector<22x16xf32> to vector<16x16xf32>
      %260 = vector.broadcast %258 : f32 to vector<16x16xf32>
      %261 = arith.mulf %260, %259 : vector<16x16xf32>
      %262 = arith.addf %257, %261 : vector<16x16xf32>
      %c19_79 = arith.constant 19 : index
      %263 = memref.load %arg2[%c19_79] : memref<98xf32, #tpu.memory_space<smem>>
      %264 = vector.extract_strided_slice %252 {offsets = [2, 0], sizes = [16, 16], strides = [1, 1]} : vector<22x16xf32> to vector<16x16xf32>
      %265 = vector.broadcast %263 : f32 to vector<16x16xf32>
      %266 = arith.mulf %265, %264 : vector<16x16xf32>
      %267 = arith.addf %262, %266 : vector<16x16xf32>
      %c26 = arith.constant 26 : index
      %268 = memref.load %arg2[%c26] : memref<98xf32, #tpu.memory_space<smem>>
      %269 = vector.extract_strided_slice %252 {offsets = [3, 0], sizes = [16, 16], strides = [1, 1]} : vector<22x16xf32> to vector<16x16xf32>
      %270 = vector.broadcast %268 : f32 to vector<16x16xf32>
      %271 = arith.mulf %270, %269 : vector<16x16xf32>
      %272 = arith.addf %267, %271 : vector<16x16xf32>
      %c33 = arith.constant 33 : index
      %273 = memref.load %arg2[%c33] : memref<98xf32, #tpu.memory_space<smem>>
      %274 = vector.extract_strided_slice %252 {offsets = [4, 0], sizes = [16, 16], strides = [1, 1]} : vector<22x16xf32> to vector<16x16xf32>
      %275 = vector.broadcast %273 : f32 to vector<16x16xf32>
      %276 = arith.mulf %275, %274 : vector<16x16xf32>
      %277 = arith.addf %272, %276 : vector<16x16xf32>
      %c40 = arith.constant 40 : index
      %278 = memref.load %arg2[%c40] : memref<98xf32, #tpu.memory_space<smem>>
      %279 = vector.extract_strided_slice %252 {offsets = [5, 0], sizes = [16, 16], strides = [1, 1]} : vector<22x16xf32> to vector<16x16xf32>
      %280 = vector.broadcast %278 : f32 to vector<16x16xf32>
      %281 = arith.mulf %280, %279 : vector<16x16xf32>
      %282 = arith.addf %277, %281 : vector<16x16xf32>
      %c47 = arith.constant 47 : index
      %283 = memref.load %arg2[%c47] : memref<98xf32, #tpu.memory_space<smem>>
      %284 = vector.extract_strided_slice %252 {offsets = [6, 0], sizes = [16, 16], strides = [1, 1]} : vector<22x16xf32> to vector<16x16xf32>
      %285 = vector.broadcast %283 : f32 to vector<16x16xf32>
      %286 = arith.mulf %285, %284 : vector<16x16xf32>
      %287 = arith.addf %282, %286 : vector<16x16xf32>
      %c0_80 = arith.constant 0 : index
      %c0_81 = arith.constant 0 : index
      %c6 = arith.constant 6 : index
      %288 = vector.load %arg7[%c0_80, %c0_81, %c6] : memref<2x22x22xf32, #tpu.memory_space<vmem>>, vector<1x22x16xf32>
      %289 = vector.shape_cast %288 : vector<1x22x16xf32> to vector<22x16xf32>
      %c6_82 = arith.constant 6 : index
      %290 = memref.load %arg2[%c6_82] : memref<98xf32, #tpu.memory_space<smem>>
      %291 = vector.extract_strided_slice %289 {offsets = [0, 0], sizes = [16, 16], strides = [1, 1]} : vector<22x16xf32> to vector<16x16xf32>
      %292 = vector.broadcast %290 : f32 to vector<16x16xf32>
      %293 = arith.mulf %292, %291 : vector<16x16xf32>
      %294 = arith.addf %287, %293 : vector<16x16xf32>
      %c13 = arith.constant 13 : index
      %295 = memref.load %arg2[%c13] : memref<98xf32, #tpu.memory_space<smem>>
      %296 = vector.extract_strided_slice %289 {offsets = [1, 0], sizes = [16, 16], strides = [1, 1]} : vector<22x16xf32> to vector<16x16xf32>
      %297 = vector.broadcast %295 : f32 to vector<16x16xf32>
      %298 = arith.mulf %297, %296 : vector<16x16xf32>
      %299 = arith.addf %294, %298 : vector<16x16xf32>
      %c20 = arith.constant 20 : index
      %300 = memref.load %arg2[%c20] : memref<98xf32, #tpu.memory_space<smem>>
      %301 = vector.extract_strided_slice %289 {offsets = [2, 0], sizes = [16, 16], strides = [1, 1]} : vector<22x16xf32> to vector<16x16xf32>
      %302 = vector.broadcast %300 : f32 to vector<16x16xf32>
      %303 = arith.mulf %302, %301 : vector<16x16xf32>
      %304 = arith.addf %299, %303 : vector<16x16xf32>
      %c27 = arith.constant 27 : index
      %305 = memref.load %arg2[%c27] : memref<98xf32, #tpu.memory_space<smem>>
      %306 = vector.extract_strided_slice %289 {offsets = [3, 0], sizes = [16, 16], strides = [1, 1]} : vector<22x16xf32> to vector<16x16xf32>
      %307 = vector.broadcast %305 : f32 to vector<16x16xf32>
      %308 = arith.mulf %307, %306 : vector<16x16xf32>
      %309 = arith.addf %304, %308 : vector<16x16xf32>
      %c34 = arith.constant 34 : index
      %310 = memref.load %arg2[%c34] : memref<98xf32, #tpu.memory_space<smem>>
      %311 = vector.extract_strided_slice %289 {offsets = [4, 0], sizes = [16, 16], strides = [1, 1]} : vector<22x16xf32> to vector<16x16xf32>
      %312 = vector.broadcast %310 : f32 to vector<16x16xf32>
      %313 = arith.mulf %312, %311 : vector<16x16xf32>
      %314 = arith.addf %309, %313 : vector<16x16xf32>
      %c41 = arith.constant 41 : index
      %315 = memref.load %arg2[%c41] : memref<98xf32, #tpu.memory_space<smem>>
      %316 = vector.extract_strided_slice %289 {offsets = [5, 0], sizes = [16, 16], strides = [1, 1]} : vector<22x16xf32> to vector<16x16xf32>
      %317 = vector.broadcast %315 : f32 to vector<16x16xf32>
      %318 = arith.mulf %317, %316 : vector<16x16xf32>
      %319 = arith.addf %314, %318 : vector<16x16xf32>
      %c48 = arith.constant 48 : index
      %320 = memref.load %arg2[%c48] : memref<98xf32, #tpu.memory_space<smem>>
      %321 = vector.extract_strided_slice %289 {offsets = [6, 0], sizes = [16, 16], strides = [1, 1]} : vector<22x16xf32> to vector<16x16xf32>
      %322 = vector.broadcast %320 : f32 to vector<16x16xf32>
      %323 = arith.mulf %322, %321 : vector<16x16xf32>
      %324 = arith.addf %319, %323 : vector<16x16xf32>
      %c1_83 = arith.constant 1 : index
      %c0_84 = arith.constant 0 : index
      %c0_85 = arith.constant 0 : index
      %325 = vector.load %arg7[%c1_83, %c0_84, %c0_85] : memref<2x22x22xf32, #tpu.memory_space<vmem>>, vector<1x22x16xf32>
      %326 = vector.shape_cast %325 : vector<1x22x16xf32> to vector<22x16xf32>
      %c49 = arith.constant 49 : index
      %327 = memref.load %arg2[%c49] : memref<98xf32, #tpu.memory_space<smem>>
      %328 = vector.extract_strided_slice %326 {offsets = [0, 0], sizes = [16, 16], strides = [1, 1]} : vector<22x16xf32> to vector<16x16xf32>
      %329 = vector.broadcast %327 : f32 to vector<16x16xf32>
      %330 = arith.mulf %329, %328 : vector<16x16xf32>
      %331 = arith.addf %324, %330 : vector<16x16xf32>
      %c56 = arith.constant 56 : index
      %332 = memref.load %arg2[%c56] : memref<98xf32, #tpu.memory_space<smem>>
      %333 = vector.extract_strided_slice %326 {offsets = [1, 0], sizes = [16, 16], strides = [1, 1]} : vector<22x16xf32> to vector<16x16xf32>
      %334 = vector.broadcast %332 : f32 to vector<16x16xf32>
      %335 = arith.mulf %334, %333 : vector<16x16xf32>
      %336 = arith.addf %331, %335 : vector<16x16xf32>
      %c63 = arith.constant 63 : index
      %337 = memref.load %arg2[%c63] : memref<98xf32, #tpu.memory_space<smem>>
      %338 = vector.extract_strided_slice %326 {offsets = [2, 0], sizes = [16, 16], strides = [1, 1]} : vector<22x16xf32> to vector<16x16xf32>
      %339 = vector.broadcast %337 : f32 to vector<16x16xf32>
      %340 = arith.mulf %339, %338 : vector<16x16xf32>
      %341 = arith.addf %336, %340 : vector<16x16xf32>
      %c70 = arith.constant 70 : index
      %342 = memref.load %arg2[%c70] : memref<98xf32, #tpu.memory_space<smem>>
      %343 = vector.extract_strided_slice %326 {offsets = [3, 0], sizes = [16, 16], strides = [1, 1]} : vector<22x16xf32> to vector<16x16xf32>
      %344 = vector.broadcast %342 : f32 to vector<16x16xf32>
      %345 = arith.mulf %344, %343 : vector<16x16xf32>
      %346 = arith.addf %341, %345 : vector<16x16xf32>
      %c77 = arith.constant 77 : index
      %347 = memref.load %arg2[%c77] : memref<98xf32, #tpu.memory_space<smem>>
      %348 = vector.extract_strided_slice %326 {offsets = [4, 0], sizes = [16, 16], strides = [1, 1]} : vector<22x16xf32> to vector<16x16xf32>
      %349 = vector.broadcast %347 : f32 to vector<16x16xf32>
      %350 = arith.mulf %349, %348 : vector<16x16xf32>
      %351 = arith.addf %346, %350 : vector<16x16xf32>
      %c84 = arith.constant 84 : index
      %352 = memref.load %arg2[%c84] : memref<98xf32, #tpu.memory_space<smem>>
      %353 = vector.extract_strided_slice %326 {offsets = [5, 0], sizes = [16, 16], strides = [1, 1]} : vector<22x16xf32> to vector<16x16xf32>
      %354 = vector.broadcast %352 : f32 to vector<16x16xf32>
      %355 = arith.mulf %354, %353 : vector<16x16xf32>
      %356 = arith.addf %351, %355 : vector<16x16xf32>
      %c91 = arith.constant 91 : index
      %357 = memref.load %arg2[%c91] : memref<98xf32, #tpu.memory_space<smem>>
      %358 = vector.extract_strided_slice %326 {offsets = [6, 0], sizes = [16, 16], strides = [1, 1]} : vector<22x16xf32> to vector<16x16xf32>
      %359 = vector.broadcast %357 : f32 to vector<16x16xf32>
      %360 = arith.mulf %359, %358 : vector<16x16xf32>
      %361 = arith.addf %356, %360 : vector<16x16xf32>
      %c1_86 = arith.constant 1 : index
      %c0_87 = arith.constant 0 : index
      %c1_88 = arith.constant 1 : index
      %362 = vector.load %arg7[%c1_86, %c0_87, %c1_88] : memref<2x22x22xf32, #tpu.memory_space<vmem>>, vector<1x22x16xf32>
      %363 = vector.shape_cast %362 : vector<1x22x16xf32> to vector<22x16xf32>
      %c50 = arith.constant 50 : index
      %364 = memref.load %arg2[%c50] : memref<98xf32, #tpu.memory_space<smem>>
      %365 = vector.extract_strided_slice %363 {offsets = [0, 0], sizes = [16, 16], strides = [1, 1]} : vector<22x16xf32> to vector<16x16xf32>
      %366 = vector.broadcast %364 : f32 to vector<16x16xf32>
      %367 = arith.mulf %366, %365 : vector<16x16xf32>
      %368 = arith.addf %361, %367 : vector<16x16xf32>
      %c57 = arith.constant 57 : index
      %369 = memref.load %arg2[%c57] : memref<98xf32, #tpu.memory_space<smem>>
      %370 = vector.extract_strided_slice %363 {offsets = [1, 0], sizes = [16, 16], strides = [1, 1]} : vector<22x16xf32> to vector<16x16xf32>
      %371 = vector.broadcast %369 : f32 to vector<16x16xf32>
      %372 = arith.mulf %371, %370 : vector<16x16xf32>
      %373 = arith.addf %368, %372 : vector<16x16xf32>
      %c64 = arith.constant 64 : index
      %374 = memref.load %arg2[%c64] : memref<98xf32, #tpu.memory_space<smem>>
      %375 = vector.extract_strided_slice %363 {offsets = [2, 0], sizes = [16, 16], strides = [1, 1]} : vector<22x16xf32> to vector<16x16xf32>
      %376 = vector.broadcast %374 : f32 to vector<16x16xf32>
      %377 = arith.mulf %376, %375 : vector<16x16xf32>
      %378 = arith.addf %373, %377 : vector<16x16xf32>
      %c71 = arith.constant 71 : index
      %379 = memref.load %arg2[%c71] : memref<98xf32, #tpu.memory_space<smem>>
      %380 = vector.extract_strided_slice %363 {offsets = [3, 0], sizes = [16, 16], strides = [1, 1]} : vector<22x16xf32> to vector<16x16xf32>
      %381 = vector.broadcast %379 : f32 to vector<16x16xf32>
      %382 = arith.mulf %381, %380 : vector<16x16xf32>
      %383 = arith.addf %378, %382 : vector<16x16xf32>
      %c78 = arith.constant 78 : index
      %384 = memref.load %arg2[%c78] : memref<98xf32, #tpu.memory_space<smem>>
      %385 = vector.extract_strided_slice %363 {offsets = [4, 0], sizes = [16, 16], strides = [1, 1]} : vector<22x16xf32> to vector<16x16xf32>
      %386 = vector.broadcast %384 : f32 to vector<16x16xf32>
      %387 = arith.mulf %386, %385 : vector<16x16xf32>
      %388 = arith.addf %383, %387 : vector<16x16xf32>
      %c85 = arith.constant 85 : index
      %389 = memref.load %arg2[%c85] : memref<98xf32, #tpu.memory_space<smem>>
      %390 = vector.extract_strided_slice %363 {offsets = [5, 0], sizes = [16, 16], strides = [1, 1]} : vector<22x16xf32> to vector<16x16xf32>
      %391 = vector.broadcast %389 : f32 to vector<16x16xf32>
      %392 = arith.mulf %391, %390 : vector<16x16xf32>
      %393 = arith.addf %388, %392 : vector<16x16xf32>
      %c92 = arith.constant 92 : index
      %394 = memref.load %arg2[%c92] : memref<98xf32, #tpu.memory_space<smem>>
      %395 = vector.extract_strided_slice %363 {offsets = [6, 0], sizes = [16, 16], strides = [1, 1]} : vector<22x16xf32> to vector<16x16xf32>
      %396 = vector.broadcast %394 : f32 to vector<16x16xf32>
      %397 = arith.mulf %396, %395 : vector<16x16xf32>
      %398 = arith.addf %393, %397 : vector<16x16xf32>
      %c1_89 = arith.constant 1 : index
      %c0_90 = arith.constant 0 : index
      %c2_91 = arith.constant 2 : index
      %399 = vector.load %arg7[%c1_89, %c0_90, %c2_91] : memref<2x22x22xf32, #tpu.memory_space<vmem>>, vector<1x22x16xf32>
      %400 = vector.shape_cast %399 : vector<1x22x16xf32> to vector<22x16xf32>
      %c51 = arith.constant 51 : index
      %401 = memref.load %arg2[%c51] : memref<98xf32, #tpu.memory_space<smem>>
      %402 = vector.extract_strided_slice %400 {offsets = [0, 0], sizes = [16, 16], strides = [1, 1]} : vector<22x16xf32> to vector<16x16xf32>
      %403 = vector.broadcast %401 : f32 to vector<16x16xf32>
      %404 = arith.mulf %403, %402 : vector<16x16xf32>
      %405 = arith.addf %398, %404 : vector<16x16xf32>
      %c58 = arith.constant 58 : index
      %406 = memref.load %arg2[%c58] : memref<98xf32, #tpu.memory_space<smem>>
      %407 = vector.extract_strided_slice %400 {offsets = [1, 0], sizes = [16, 16], strides = [1, 1]} : vector<22x16xf32> to vector<16x16xf32>
      %408 = vector.broadcast %406 : f32 to vector<16x16xf32>
      %409 = arith.mulf %408, %407 : vector<16x16xf32>
      %410 = arith.addf %405, %409 : vector<16x16xf32>
      %c65 = arith.constant 65 : index
      %411 = memref.load %arg2[%c65] : memref<98xf32, #tpu.memory_space<smem>>
      %412 = vector.extract_strided_slice %400 {offsets = [2, 0], sizes = [16, 16], strides = [1, 1]} : vector<22x16xf32> to vector<16x16xf32>
      %413 = vector.broadcast %411 : f32 to vector<16x16xf32>
      %414 = arith.mulf %413, %412 : vector<16x16xf32>
      %415 = arith.addf %410, %414 : vector<16x16xf32>
      %c72 = arith.constant 72 : index
      %416 = memref.load %arg2[%c72] : memref<98xf32, #tpu.memory_space<smem>>
      %417 = vector.extract_strided_slice %400 {offsets = [3, 0], sizes = [16, 16], strides = [1, 1]} : vector<22x16xf32> to vector<16x16xf32>
      %418 = vector.broadcast %416 : f32 to vector<16x16xf32>
      %419 = arith.mulf %418, %417 : vector<16x16xf32>
      %420 = arith.addf %415, %419 : vector<16x16xf32>
      %c79 = arith.constant 79 : index
      %421 = memref.load %arg2[%c79] : memref<98xf32, #tpu.memory_space<smem>>
      %422 = vector.extract_strided_slice %400 {offsets = [4, 0], sizes = [16, 16], strides = [1, 1]} : vector<22x16xf32> to vector<16x16xf32>
      %423 = vector.broadcast %421 : f32 to vector<16x16xf32>
      %424 = arith.mulf %423, %422 : vector<16x16xf32>
      %425 = arith.addf %420, %424 : vector<16x16xf32>
      %c86 = arith.constant 86 : index
      %426 = memref.load %arg2[%c86] : memref<98xf32, #tpu.memory_space<smem>>
      %427 = vector.extract_strided_slice %400 {offsets = [5, 0], sizes = [16, 16], strides = [1, 1]} : vector<22x16xf32> to vector<16x16xf32>
      %428 = vector.broadcast %426 : f32 to vector<16x16xf32>
      %429 = arith.mulf %428, %427 : vector<16x16xf32>
      %430 = arith.addf %425, %429 : vector<16x16xf32>
      %c93 = arith.constant 93 : index
      %431 = memref.load %arg2[%c93] : memref<98xf32, #tpu.memory_space<smem>>
      %432 = vector.extract_strided_slice %400 {offsets = [6, 0], sizes = [16, 16], strides = [1, 1]} : vector<22x16xf32> to vector<16x16xf32>
      %433 = vector.broadcast %431 : f32 to vector<16x16xf32>
      %434 = arith.mulf %433, %432 : vector<16x16xf32>
      %435 = arith.addf %430, %434 : vector<16x16xf32>
      %c1_92 = arith.constant 1 : index
      %c0_93 = arith.constant 0 : index
      %c3_94 = arith.constant 3 : index
      %436 = vector.load %arg7[%c1_92, %c0_93, %c3_94] : memref<2x22x22xf32, #tpu.memory_space<vmem>>, vector<1x22x16xf32>
      %437 = vector.shape_cast %436 : vector<1x22x16xf32> to vector<22x16xf32>
      %c52 = arith.constant 52 : index
      %438 = memref.load %arg2[%c52] : memref<98xf32, #tpu.memory_space<smem>>
      %439 = vector.extract_strided_slice %437 {offsets = [0, 0], sizes = [16, 16], strides = [1, 1]} : vector<22x16xf32> to vector<16x16xf32>
      %440 = vector.broadcast %438 : f32 to vector<16x16xf32>
      %441 = arith.mulf %440, %439 : vector<16x16xf32>
      %442 = arith.addf %435, %441 : vector<16x16xf32>
      %c59 = arith.constant 59 : index
      %443 = memref.load %arg2[%c59] : memref<98xf32, #tpu.memory_space<smem>>
      %444 = vector.extract_strided_slice %437 {offsets = [1, 0], sizes = [16, 16], strides = [1, 1]} : vector<22x16xf32> to vector<16x16xf32>
      %445 = vector.broadcast %443 : f32 to vector<16x16xf32>
      %446 = arith.mulf %445, %444 : vector<16x16xf32>
      %447 = arith.addf %442, %446 : vector<16x16xf32>
      %c66 = arith.constant 66 : index
      %448 = memref.load %arg2[%c66] : memref<98xf32, #tpu.memory_space<smem>>
      %449 = vector.extract_strided_slice %437 {offsets = [2, 0], sizes = [16, 16], strides = [1, 1]} : vector<22x16xf32> to vector<16x16xf32>
      %450 = vector.broadcast %448 : f32 to vector<16x16xf32>
      %451 = arith.mulf %450, %449 : vector<16x16xf32>
      %452 = arith.addf %447, %451 : vector<16x16xf32>
      %c73 = arith.constant 73 : index
      %453 = memref.load %arg2[%c73] : memref<98xf32, #tpu.memory_space<smem>>
      %454 = vector.extract_strided_slice %437 {offsets = [3, 0], sizes = [16, 16], strides = [1, 1]} : vector<22x16xf32> to vector<16x16xf32>
      %455 = vector.broadcast %453 : f32 to vector<16x16xf32>
      %456 = arith.mulf %455, %454 : vector<16x16xf32>
      %457 = arith.addf %452, %456 : vector<16x16xf32>
      %c80 = arith.constant 80 : index
      %458 = memref.load %arg2[%c80] : memref<98xf32, #tpu.memory_space<smem>>
      %459 = vector.extract_strided_slice %437 {offsets = [4, 0], sizes = [16, 16], strides = [1, 1]} : vector<22x16xf32> to vector<16x16xf32>
      %460 = vector.broadcast %458 : f32 to vector<16x16xf32>
      %461 = arith.mulf %460, %459 : vector<16x16xf32>
      %462 = arith.addf %457, %461 : vector<16x16xf32>
      %c87 = arith.constant 87 : index
      %463 = memref.load %arg2[%c87] : memref<98xf32, #tpu.memory_space<smem>>
      %464 = vector.extract_strided_slice %437 {offsets = [5, 0], sizes = [16, 16], strides = [1, 1]} : vector<22x16xf32> to vector<16x16xf32>
      %465 = vector.broadcast %463 : f32 to vector<16x16xf32>
      %466 = arith.mulf %465, %464 : vector<16x16xf32>
      %467 = arith.addf %462, %466 : vector<16x16xf32>
      %c94 = arith.constant 94 : index
      %468 = memref.load %arg2[%c94] : memref<98xf32, #tpu.memory_space<smem>>
      %469 = vector.extract_strided_slice %437 {offsets = [6, 0], sizes = [16, 16], strides = [1, 1]} : vector<22x16xf32> to vector<16x16xf32>
      %470 = vector.broadcast %468 : f32 to vector<16x16xf32>
      %471 = arith.mulf %470, %469 : vector<16x16xf32>
      %472 = arith.addf %467, %471 : vector<16x16xf32>
      %c1_95 = arith.constant 1 : index
      %c0_96 = arith.constant 0 : index
      %c4_97 = arith.constant 4 : index
      %473 = vector.load %arg7[%c1_95, %c0_96, %c4_97] : memref<2x22x22xf32, #tpu.memory_space<vmem>>, vector<1x22x16xf32>
      %474 = vector.shape_cast %473 : vector<1x22x16xf32> to vector<22x16xf32>
      %c53 = arith.constant 53 : index
      %475 = memref.load %arg2[%c53] : memref<98xf32, #tpu.memory_space<smem>>
      %476 = vector.extract_strided_slice %474 {offsets = [0, 0], sizes = [16, 16], strides = [1, 1]} : vector<22x16xf32> to vector<16x16xf32>
      %477 = vector.broadcast %475 : f32 to vector<16x16xf32>
      %478 = arith.mulf %477, %476 : vector<16x16xf32>
      %479 = arith.addf %472, %478 : vector<16x16xf32>
      %c60 = arith.constant 60 : index
      %480 = memref.load %arg2[%c60] : memref<98xf32, #tpu.memory_space<smem>>
      %481 = vector.extract_strided_slice %474 {offsets = [1, 0], sizes = [16, 16], strides = [1, 1]} : vector<22x16xf32> to vector<16x16xf32>
      %482 = vector.broadcast %480 : f32 to vector<16x16xf32>
      %483 = arith.mulf %482, %481 : vector<16x16xf32>
      %484 = arith.addf %479, %483 : vector<16x16xf32>
      %c67 = arith.constant 67 : index
      %485 = memref.load %arg2[%c67] : memref<98xf32, #tpu.memory_space<smem>>
      %486 = vector.extract_strided_slice %474 {offsets = [2, 0], sizes = [16, 16], strides = [1, 1]} : vector<22x16xf32> to vector<16x16xf32>
      %487 = vector.broadcast %485 : f32 to vector<16x16xf32>
      %488 = arith.mulf %487, %486 : vector<16x16xf32>
      %489 = arith.addf %484, %488 : vector<16x16xf32>
      %c74 = arith.constant 74 : index
      %490 = memref.load %arg2[%c74] : memref<98xf32, #tpu.memory_space<smem>>
      %491 = vector.extract_strided_slice %474 {offsets = [3, 0], sizes = [16, 16], strides = [1, 1]} : vector<22x16xf32> to vector<16x16xf32>
      %492 = vector.broadcast %490 : f32 to vector<16x16xf32>
      %493 = arith.mulf %492, %491 : vector<16x16xf32>
      %494 = arith.addf %489, %493 : vector<16x16xf32>
      %c81 = arith.constant 81 : index
      %495 = memref.load %arg2[%c81] : memref<98xf32, #tpu.memory_space<smem>>
      %496 = vector.extract_strided_slice %474 {offsets = [4, 0], sizes = [16, 16], strides = [1, 1]} : vector<22x16xf32> to vector<16x16xf32>
      %497 = vector.broadcast %495 : f32 to vector<16x16xf32>
      %498 = arith.mulf %497, %496 : vector<16x16xf32>
      %499 = arith.addf %494, %498 : vector<16x16xf32>
      %c88 = arith.constant 88 : index
      %500 = memref.load %arg2[%c88] : memref<98xf32, #tpu.memory_space<smem>>
      %501 = vector.extract_strided_slice %474 {offsets = [5, 0], sizes = [16, 16], strides = [1, 1]} : vector<22x16xf32> to vector<16x16xf32>
      %502 = vector.broadcast %500 : f32 to vector<16x16xf32>
      %503 = arith.mulf %502, %501 : vector<16x16xf32>
      %504 = arith.addf %499, %503 : vector<16x16xf32>
      %c95 = arith.constant 95 : index
      %505 = memref.load %arg2[%c95] : memref<98xf32, #tpu.memory_space<smem>>
      %506 = vector.extract_strided_slice %474 {offsets = [6, 0], sizes = [16, 16], strides = [1, 1]} : vector<22x16xf32> to vector<16x16xf32>
      %507 = vector.broadcast %505 : f32 to vector<16x16xf32>
      %508 = arith.mulf %507, %506 : vector<16x16xf32>
      %509 = arith.addf %504, %508 : vector<16x16xf32>
      %c1_98 = arith.constant 1 : index
      %c0_99 = arith.constant 0 : index
      %c5_100 = arith.constant 5 : index
      %510 = vector.load %arg7[%c1_98, %c0_99, %c5_100] : memref<2x22x22xf32, #tpu.memory_space<vmem>>, vector<1x22x16xf32>
      %511 = vector.shape_cast %510 : vector<1x22x16xf32> to vector<22x16xf32>
      %c54 = arith.constant 54 : index
      %512 = memref.load %arg2[%c54] : memref<98xf32, #tpu.memory_space<smem>>
      %513 = vector.extract_strided_slice %511 {offsets = [0, 0], sizes = [16, 16], strides = [1, 1]} : vector<22x16xf32> to vector<16x16xf32>
      %514 = vector.broadcast %512 : f32 to vector<16x16xf32>
      %515 = arith.mulf %514, %513 : vector<16x16xf32>
      %516 = arith.addf %509, %515 : vector<16x16xf32>
      %c61 = arith.constant 61 : index
      %517 = memref.load %arg2[%c61] : memref<98xf32, #tpu.memory_space<smem>>
      %518 = vector.extract_strided_slice %511 {offsets = [1, 0], sizes = [16, 16], strides = [1, 1]} : vector<22x16xf32> to vector<16x16xf32>
      %519 = vector.broadcast %517 : f32 to vector<16x16xf32>
      %520 = arith.mulf %519, %518 : vector<16x16xf32>
      %521 = arith.addf %516, %520 : vector<16x16xf32>
      %c68 = arith.constant 68 : index
      %522 = memref.load %arg2[%c68] : memref<98xf32, #tpu.memory_space<smem>>
      %523 = vector.extract_strided_slice %511 {offsets = [2, 0], sizes = [16, 16], strides = [1, 1]} : vector<22x16xf32> to vector<16x16xf32>
      %524 = vector.broadcast %522 : f32 to vector<16x16xf32>
      %525 = arith.mulf %524, %523 : vector<16x16xf32>
      %526 = arith.addf %521, %525 : vector<16x16xf32>
      %c75 = arith.constant 75 : index
      %527 = memref.load %arg2[%c75] : memref<98xf32, #tpu.memory_space<smem>>
      %528 = vector.extract_strided_slice %511 {offsets = [3, 0], sizes = [16, 16], strides = [1, 1]} : vector<22x16xf32> to vector<16x16xf32>
      %529 = vector.broadcast %527 : f32 to vector<16x16xf32>
      %530 = arith.mulf %529, %528 : vector<16x16xf32>
      %531 = arith.addf %526, %530 : vector<16x16xf32>
      %c82 = arith.constant 82 : index
      %532 = memref.load %arg2[%c82] : memref<98xf32, #tpu.memory_space<smem>>
      %533 = vector.extract_strided_slice %511 {offsets = [4, 0], sizes = [16, 16], strides = [1, 1]} : vector<22x16xf32> to vector<16x16xf32>
      %534 = vector.broadcast %532 : f32 to vector<16x16xf32>
      %535 = arith.mulf %534, %533 : vector<16x16xf32>
      %536 = arith.addf %531, %535 : vector<16x16xf32>
      %c89 = arith.constant 89 : index
      %537 = memref.load %arg2[%c89] : memref<98xf32, #tpu.memory_space<smem>>
      %538 = vector.extract_strided_slice %511 {offsets = [5, 0], sizes = [16, 16], strides = [1, 1]} : vector<22x16xf32> to vector<16x16xf32>
      %539 = vector.broadcast %537 : f32 to vector<16x16xf32>
      %540 = arith.mulf %539, %538 : vector<16x16xf32>
      %541 = arith.addf %536, %540 : vector<16x16xf32>
      %c96 = arith.constant 96 : index
      %542 = memref.load %arg2[%c96] : memref<98xf32, #tpu.memory_space<smem>>
      %543 = vector.extract_strided_slice %511 {offsets = [6, 0], sizes = [16, 16], strides = [1, 1]} : vector<22x16xf32> to vector<16x16xf32>
      %544 = vector.broadcast %542 : f32 to vector<16x16xf32>
      %545 = arith.mulf %544, %543 : vector<16x16xf32>
      %546 = arith.addf %541, %545 : vector<16x16xf32>
      %c1_101 = arith.constant 1 : index
      %c0_102 = arith.constant 0 : index
      %c6_103 = arith.constant 6 : index
      %547 = vector.load %arg7[%c1_101, %c0_102, %c6_103] : memref<2x22x22xf32, #tpu.memory_space<vmem>>, vector<1x22x16xf32>
      %548 = vector.shape_cast %547 : vector<1x22x16xf32> to vector<22x16xf32>
      %c55 = arith.constant 55 : index
      %549 = memref.load %arg2[%c55] : memref<98xf32, #tpu.memory_space<smem>>
      %550 = vector.extract_strided_slice %548 {offsets = [0, 0], sizes = [16, 16], strides = [1, 1]} : vector<22x16xf32> to vector<16x16xf32>
      %551 = vector.broadcast %549 : f32 to vector<16x16xf32>
      %552 = arith.mulf %551, %550 : vector<16x16xf32>
      %553 = arith.addf %546, %552 : vector<16x16xf32>
      %c62 = arith.constant 62 : index
      %554 = memref.load %arg2[%c62] : memref<98xf32, #tpu.memory_space<smem>>
      %555 = vector.extract_strided_slice %548 {offsets = [1, 0], sizes = [16, 16], strides = [1, 1]} : vector<22x16xf32> to vector<16x16xf32>
      %556 = vector.broadcast %554 : f32 to vector<16x16xf32>
      %557 = arith.mulf %556, %555 : vector<16x16xf32>
      %558 = arith.addf %553, %557 : vector<16x16xf32>
      %c69 = arith.constant 69 : index
      %559 = memref.load %arg2[%c69] : memref<98xf32, #tpu.memory_space<smem>>
      %560 = vector.extract_strided_slice %548 {offsets = [2, 0], sizes = [16, 16], strides = [1, 1]} : vector<22x16xf32> to vector<16x16xf32>
      %561 = vector.broadcast %559 : f32 to vector<16x16xf32>
      %562 = arith.mulf %561, %560 : vector<16x16xf32>
      %563 = arith.addf %558, %562 : vector<16x16xf32>
      %c76 = arith.constant 76 : index
      %564 = memref.load %arg2[%c76] : memref<98xf32, #tpu.memory_space<smem>>
      %565 = vector.extract_strided_slice %548 {offsets = [3, 0], sizes = [16, 16], strides = [1, 1]} : vector<22x16xf32> to vector<16x16xf32>
      %566 = vector.broadcast %564 : f32 to vector<16x16xf32>
      %567 = arith.mulf %566, %565 : vector<16x16xf32>
      %568 = arith.addf %563, %567 : vector<16x16xf32>
      %c83 = arith.constant 83 : index
      %569 = memref.load %arg2[%c83] : memref<98xf32, #tpu.memory_space<smem>>
      %570 = vector.extract_strided_slice %548 {offsets = [4, 0], sizes = [16, 16], strides = [1, 1]} : vector<22x16xf32> to vector<16x16xf32>
      %571 = vector.broadcast %569 : f32 to vector<16x16xf32>
      %572 = arith.mulf %571, %570 : vector<16x16xf32>
      %573 = arith.addf %568, %572 : vector<16x16xf32>
      %c90 = arith.constant 90 : index
      %574 = memref.load %arg2[%c90] : memref<98xf32, #tpu.memory_space<smem>>
      %575 = vector.extract_strided_slice %548 {offsets = [5, 0], sizes = [16, 16], strides = [1, 1]} : vector<22x16xf32> to vector<16x16xf32>
      %576 = vector.broadcast %574 : f32 to vector<16x16xf32>
      %577 = arith.mulf %576, %575 : vector<16x16xf32>
      %578 = arith.addf %573, %577 : vector<16x16xf32>
      %c97 = arith.constant 97 : index
      %579 = memref.load %arg2[%c97] : memref<98xf32, #tpu.memory_space<smem>>
      %580 = vector.extract_strided_slice %548 {offsets = [6, 0], sizes = [16, 16], strides = [1, 1]} : vector<22x16xf32> to vector<16x16xf32>
      %581 = vector.broadcast %579 : f32 to vector<16x16xf32>
      %582 = arith.mulf %581, %580 : vector<16x16xf32>
      %583 = arith.addf %578, %582 : vector<16x16xf32>
      %584 = arith.negf %583 : vector<16x16xf32>
      %585 = math.exp %584 : vector<16x16xf32>
      %cst_104 = arith.constant 1.000000e+00 : f32
      %586 = vector.broadcast %cst_104 : f32 to vector<16x16xf32>
      %587 = arith.addf %586, %585 : vector<16x16xf32>
      %588 = arith.divf %586, %587 : vector<16x16xf32>
      %c0_105 = arith.constant 0 : index
      %c0_106 = arith.constant 0 : index
      %c0_107 = arith.constant 0 : index
      %c0_108 = arith.constant 0 : index
      %589 = vector.load %arg4[%c0_105, %c0_106, %c0_107, %c0_108] : memref<1x1x16x16xf32, #tpu.memory_space<vmem>>, vector<1x1x16x16xf32>
      %590 = vector.shape_cast %589 : vector<1x1x16x16xf32> to vector<16x16xf32>
      %591 = vector.shape_cast %588 : vector<16x16xf32> to vector<1x1x16x16xf32>
      tpu.vector_store %arg4[%c0_105, %c0_106, %c0_107, %c0_108], %591 {strides = array<i32>} : memref<1x1x16x16xf32, #tpu.memory_space<vmem>>, vector<1x1x16x16xf32>,
    } else {
    }
    return
  }
  func.func @transform_0(%arg0: i32, %arg1: i32, %arg2: memref<98xf32, #tpu.memory_space<smem>>) -> (i32, i32, i32, i32) {
    %c0_i32 = arith.constant 0 : i32
    %c0_i32_0 = arith.constant 0 : i32
    %c0_i32_1 = arith.constant 0 : i32
    return %arg0, %arg1, %c0_i32, %c0_i32_0 : i32, i32, i32, i32
  }
  func.func @transform_1(%arg0: i32, %arg1: i32, %arg2: memref<98xf32, #tpu.memory_space<smem>>) -> (i32, i32, i32, i32) {
    %c0_i32 = arith.constant 0 : i32
    %c0_i32_0 = arith.constant 0 : i32
    %c0_i32_1 = arith.constant 0 : i32
    %c0_i32_2 = arith.constant 0 : i32
    return %arg0, %c0_i32, %c0_i32_0, %c0_i32_1 : i32, i32, i32, i32
  }
}

</mosaic_0001>

<llo_original>
// kernel: tpu_custom_call.1
$region0: #{tpu_custom_call.1}
  #allocation0 [shape = 'u32[]', space=smem, size = 0x4, offset = 0x4, fixed_abs, tag = 'smem constant byte address 0x4 - core index']
  #allocation1 [shape = 'u32[144,128]{1,0:T(1,128)}', space=vmem, size = 0x12000, scoped, tag = 'internal scratch']
  #allocation2 [shape = 'f32[16,16]{1,0:T(8,128)}', space=vmem, size = 0x2000, scoped, tag = 'scratch operand']
  #allocation3 [shape = 'f32[16,16]{1,0:T(8,128)}', space=vmem, size = 0x2000, scoped, tag = 'scratch operand']
  #allocation4 [shape = 'f32[2,22,22]{2,1,0:T(8,128)}', space=vmem, size = 0x6000, scoped, tag = 'scratch operand']
  #allocation5 [shape = 's32[1]{0}', space=sflag, size = 0x4, scoped, tag = 'scoped memory for tpu_custom_call.1']
  #allocation6 [shape = 'u8[512]{0}', space=smem, size = 0x200, scoped, tag = 'prefetched SMEM operand 0']
  %s0 = inlined_call_operand.hbm [shape: f32[98], index: 0, kind: input, shape index: {}]
  %s1 = inlined_call_operand.hbm [shape: f32[2,4,16,16], index: 1, kind: input, shape index: {}]
  %s2 = inlined_call_operand.hbm [shape: f32[2,1,16,16], index: 2, kind: output, shape index: {}]
  %s3 = sld [smem:[#allocation0]]
  $region49: #{tpu_custom_call.1} parent=0
    _
  %s5 = ssub.s32 1, %s3
  %s6 = scalar_select 0, %s5, %s3
  %8 = dma.hbm_to_smem %s0, 16, [#allocation6], [#allocation5]
  %9 = dma.done [#allocation5], 16
  %10 = sfence
  $region1: #{tpu_custom_call.1} parent=0
    #allocation7 [shape = 'u8[65536]{0}', space=vmem, size = 0x10000, scoped, tag = 'input window, operand 1']
    #allocation8 [shape = 's32[2]{0}', space=sflag, size = 0x8, scoped, tag = 'scoped memory for tpu_custom_call.1']
    #allocation9 [shape = 's32[2]{0}', space=sflag, size = 0x8, scoped, tag = 'scoped memory for tpu_custom_call.1']
    #allocation10 [shape = 'u8[16384]{0}', space=vmem, size = 0x4000, scoped, tag = 'output window, operand 0']
    %11 = vsyncpa [#allocation8], 0
    %s12 = scalar_lea.sflag [#allocation8], 1
    %13 = vsyncpa %s12, 0
    %14 = vsyncpa [#allocation9], 0
    %s15 = scalar_lea.sflag [#allocation9], 1
    %16 = vsyncpa %s15, 0
    loop: start=0, step=1, limit=4
    $region2: #{tpu_custom_call.1} parent=1 // loop_pre_header
      _
    $region3: #{tpu_custom_call.1} parent=1 // loop_header
      %s18 = sphi 0, %s22
      %p19 = scmp.ge.s32.totalorder %s18, 4
      %s25 = sphi 0, %s37
      %s26 = sphi 0, %s33
      %s27 = sphi 0, %s25
      %s28 = sphi 0, %s26
      %s29 = sphi 0, %s27
      %s30 = sphi 0, %s28
      %s42 = sphi 0, %s44
      %s45 = sphi 0, %s42
      %s46 = sphi 0, %s45
      %s62 = sphi 0, %s46
      %s68 = sphi 0, %s70
      %s71 = sphi 0, %s68
      %s72 = sphi 0, %s71
      %s88 = sphi 0, %s72
    $region4: #{tpu_custom_call.1} parent=1 // loop_header_branch
      %21 = sbr.rel (%p19) target = $region8
    $region5: #{tpu_custom_call.1} parent=1 // loop_body
      %s23 = ssub.s32 %s18, 1
      %s24 = ssub.s32 %s18, 2
      %s31 = sadd.s32 1, %s26
      %p32 = scmp.ge.s32.totalorder %s31, 1
      %s33 = scalar_select %p32, 0, %s31
      %s34 = sadd.s32 1, %s25
      %s35 = scalar_select %p32, %s34, %s25
      %p36 = scmp.ge.s32.totalorder %s35, 2
      %s37 = scalar_select %p36, 0, %s35
      %s38 = ssub.s32 %s25, %s37
      %s39 = ssub.s32 %s26, %s33
      %s40 = sor.u32 %s38, %s39
      %p41 = scmp.eq.s32.totalorder %s40, 0
      %s43 = sadd.s32 %s42, 1
      %s44 = scalar_select %p41, %s42, %s43
      %p47 = pneg %p41
      %p48 = scmp.eq.s32.totalorder %s18, 1
      %p49 = por %p47, %p48
      %p50 = scmp.ne.s32.totalorder %s42, %s45
      %p51 = scmp.eq.s32.totalorder %s18, 0
      %p52 = por %p50, %p51
      %p53 = scmp.ne.s32.totalorder %s42, %s45
      %p54 = scmp.eq.s32.totalorder %s23, 1
      %p55 = por %p53, %p54
      %p56 = scmp.ne.s32.totalorder %s45, %s46
      %p57 = scmp.eq.s32.totalorder %s23, 0
      %p58 = por %p56, %p57
      %p59 = scmp.ne.s32.totalorder %s45, %s46
      %p60 = scmp.eq.s32.totalorder %s24, 1
      %p61 = por %p59, %p60
      %p63 = scmp.ne.s32.totalorder %s46, %s62
      %p64 = scmp.eq.s32.totalorder %s24, 0
      %p65 = por %p63, %p64
      %s66 = ssub.s32 %s25, %s37
      %p67 = scmp.eq.s32.totalorder %s66, 0
      %s69 = sadd.s32 %s68, 1
      %s70 = scalar_select %p67, %s68, %s69
      %p73 = pneg %p67
      %p74 = scmp.eq.s32.totalorder %s18, 1
      %p75 = por %p73, %p74
      %p76 = scmp.ne.s32.totalorder %s68, %s71
      %p77 = scmp.eq.s32.totalorder %s18, 0
      %p78 = por %p76, %p77
      %p79 = scmp.ne.s32.totalorder %s68, %s71
      %p80 = scmp.eq.s32.totalorder %s23, 1
      %p81 = por %p79, %p80
      %p82 = scmp.ne.s32.totalorder %s71, %s72
      %p83 = scmp.eq.s32.totalorder %s23, 0
      %p84 = por %p82, %p83
      %p85 = scmp.ne.s32.totalorder %s71, %s72
      %p86 = scmp.eq.s32.totalorder %s24, 1
      %p87 = por %p85, %p86
      %p89 = scmp.ne.s32.totalorder %s72, %s88
      %p90 = scmp.eq.s32.totalorder %s24, 0
      %p91 = por %p89, %p90
      %p92 = scmp.le.s32.totalorder 1, %s18
      %p93 = scmp.lt.s32.totalorder %s18, 3
      %p94 = pnand %p92, %p93
      %p95 = pneg %p94
      // Predicated region
      $region9: #{tpu_custom_call.1} parent=5 // pred_check
        _
      $region10: #{tpu_custom_call.1} parent=5 // pred_check_branch
        %97 = sbr.rel (%p94) target = $region12
      $region11: #{tpu_custom_call.1} parent=5 // pred_region
        %s98 = ssub.s32 %s18, 1
      $region12: #{tpu_custom_call.1} parent=5 // pred_fallthru
        _
      %p99 = scmp.lt.s32.totalorder %s18, 2
      // Predicated region
      $region13: #{tpu_custom_call.1} parent=5 // pred_check
        %p100 = pneg %p99
      $region14: #{tpu_custom_call.1} parent=5 // pred_check_branch
        %102 = sbr.rel (%p100) target = $region16
      $region15: #{tpu_custom_call.1} parent=5 // pred_region
        // Predicated region
        $region17: #{tpu_custom_call.1} parent=15 // pred_check
          %p103 = pneg %p52
        $region18: #{tpu_custom_call.1} parent=15 // pred_check_branch
          %105 = sbr.rel (%p103) target = $region20
        $region19: #{tpu_custom_call.1} parent=15 // pred_region
          %s106 = sand.u32 %s42, 1
          %s107 = scalar_lea.sflag [#allocation8], %s106
          %s108 = sand.u32 %s42, 1
          %s109 = smul.addr %s108, 64
          %s110 = scalar_lea.vmem [#allocation7], %s109
          %s111 = smul.u32 4, %s26
          %s113 = ssub.s32 1024, 1024
          %114 = vsyncadd %s107, %s113
          %s115 = smul.addr %s111, 2
          %s116 = smul.addr %s25, 8
          %s117 = sadd.s32 %s115, %s116
          %s118 = smul.addr %s117, 128
          %s119 = scalar_lea.hbm %s1, %s118
          %s120 = sshll.u32 %s110, 4
          %s121 = int_to_ptr.vmem [resolvable:$true] %s120
          %126 = dma.hbm_to_vmem [thread:$0]  %s119, 1024, %s121, %s107, 128, 128, 8
        $region20: #{tpu_custom_call.1} parent=15 // pred_fallthru
          _
      $region16: #{tpu_custom_call.1} parent=5 // pred_fallthru
        _
      %p127 = scmp.le.s32.totalorder 1, %s18
      %p128 = scmp.lt.s32.totalorder %s18, 3
      %p129 = pnand %p127, %p128
      %p130 = pneg %p129
      // Predicated region
      $region21: #{tpu_custom_call.1} parent=5 // pred_check
        _
      $region22: #{tpu_custom_call.1} parent=5 // pred_check_branch
        %132 = sbr.rel (%p129) target = $region24
      $region23: #{tpu_custom_call.1} parent=5 // pred_region
        %s133 = ssub.s32 %s18, 1
        %s134 = sand.u32 %s45, 1
        %s135 = scalar_lea.sflag [#allocation8], %s134
        %s136 = sand.u32 %s45, 1
        %s137 = smul.addr %s136, 64
        %s138 = scalar_lea.vmem [#allocation7], %s137
        // Predicated region
        $region25: #{tpu_custom_call.1} parent=23 // pred_check
          %p139 = pneg %p58
        $region26: #{tpu_custom_call.1} parent=23 // pred_check_branch
          %141 = sbr.rel (%p139) target = $region28
        $region27: #{tpu_custom_call.1} parent=23 // pred_region
          %142 = dma.done %s135, 1024
        $region28: #{tpu_custom_call.1} parent=23 // pred_fallthru
          _
        %s143 = sand.u32 %s45, 1
        %s144 = scalar_lea.sflag [#allocation8], %s143
        %s145 = sand.u32 %s45, 1
        %s146 = smul.addr %s145, 64
        %s147 = scalar_lea.vmem [#allocation7], %s146
        %p148 = pneg %p58
        %p149 = pneg %p55
        %p150 = pneg %p84
        %p151 = pneg %p81
        %s152 = sand.u32 %s71, 1
        %s153 = scalar_lea.sflag [#allocation9], %s152
        %s154 = sand.u32 %s71, 1
        %s155 = smul.addr %s154, 16
        %s156 = scalar_lea.vmem [#allocation10], %s155
        %s157 = smul.u32 4, %s28
        %p158 = scmp.eq.s32.totalorder %s28, 0
        // Predicated region
        $region29: #{tpu_custom_call.1} parent=23 // pred_check
          %p159 = pneg %p158
        $region30: #{tpu_custom_call.1} parent=23 // pred_check_branch
          %161 = sbr.rel (%p159) target = $region32
        $region31: #{tpu_custom_call.1} parent=23 // pred_region
          %vm162 = vcmask 130048
          %163 = vst.msk [vmem:[#allocation2] sm:$0xff] %vm162, 0.0
          %164 = vst.msk [vmem:[#allocation2 + $0x8] sm:$0xff] %vm162, 0.0
          %165 = vst.msk [vmem:[#allocation3] sm:$0xff] %vm162, -inf
          %166 = vst.msk [vmem:[#allocation3 + $0x8] sm:$0xff] %vm162, -inf
        $region32: #{tpu_custom_call.1} parent=23 // pred_fallthru
          _
        %v167 = vld [vmem:[%s138] sm:$0xff]
        %v168 = vld [vmem:[%s138 + $0x8] sm:$0xff]
        %s169 = scalar_lea.vmem %s138, 16 [#allocation7]
        %v170 = vld [vmem:[%s169] sm:$0xff]
        %v171 = vld [vmem:[%s169 + $0x8] sm:$0xff]
        %v172 = vadd.f32 %v167, %v170
        %v173 = vadd.f32 %v168, %v171
        %v174 = vmax.f32 %v167, %v170
        %v175 = vmax.f32 %v168, %v171
        %s176 = scalar_lea.vmem %s138, 32 [#allocation7]
        %v177 = vld [vmem:[%s176] sm:$0xff]
        %v178 = vld [vmem:[%s176 + $0x8] sm:$0xff]
        %v179 = vadd.f32 %v172, %v177
        %v180 = vadd.f32 %v173, %v178
        %v181 = vmax.f32 %v174, %v177
        %v182 = vmax.f32 %v175, %v178
        %s183 = scalar_lea.vmem %s138, 48 [#allocation7]
        %v184 = vld [vmem:[%s183] sm:$0xff]
        %v185 = vld [vmem:[%s183 + $0x8] sm:$0xff]
        %v186 = vadd.f32 %v179, %v184
        %v187 = vadd.f32 %v180, %v185
        %v188 = vmax.f32 %v181, %v184
        %v189 = vmax.f32 %v182, %v185
        %v190 = vld [vmem:[#allocation2] sm:$0xff]
        %v191 = vld [vmem:[#allocation2 + $0x8] sm:$0xff]
        %v192 = vadd.f32 %v190, %v186
        %v193 = vadd.f32 %v191, %v187
        %vm194 = vcmask 130048
        %195 = vst.msk [vmem:[#allocation2] sm:$0xff] %vm194, %v192
        %196 = vst.msk [vmem:[#allocation2 + $0x8] sm:$0xff] %vm194, %v193
        %v197 = vld [vmem:[#allocation3] sm:$0xff]
        %v198 = vld [vmem:[#allocation3 + $0x8] sm:$0xff]
        %v199 = vmax.f32 %v197, %v188
        %v200 = vmax.f32 %v198, %v189
        %201 = vst.msk [vmem:[#allocation3] sm:$0xff] %vm194, %v199
        %202 = vst.msk [vmem:[#allocation3 + $0x8] sm:$0xff] %vm194, %v200
        // Predicated region
        $region33: #{tpu_custom_call.1} parent=23 // pred_check
          %p203 = pneg %p158
        $region34: #{tpu_custom_call.1} parent=23 // pred_check_branch
          %205 = sbr.rel (%p203) target = $region36
        $region35: #{tpu_custom_call.1} parent=23 // pred_region
          %v206 = vld [vmem:[#allocation2] sm:$0xff]
          %v207 = vld [vmem:[#allocation2 + $0x8] sm:$0xff]
          %v208 = vmul.f32 %v206, 0.25
          %v209 = vmul.f32 %v207, 0.25
          %v210 = vld [vmem:[#allocation3] sm:$0xff]
          %v211 = vld [vmem:[#allocation3 + $0x8] sm:$0xff]
          %vm212 = vcmask 174080
          %213 = vst.msk [vmem:[#allocation4] sm:$0x7] %vm212, 0.0
          %214 = vst.msk [vmem:[#allocation4 + $0x13] sm:$0x7] %vm212, 0.0
          %vm215 = vcmask 23552
          %216 = vst.msk [vmem:[#allocation4 + $0x3] sm:$0xff] %vm215, 0.0
          %217 = vst.msk [vmem:[#allocation4 + $0xb] sm:$0xff] %vm215, 0.0
          %vm218 = vcmask 179352
          %219 = vst.msk [vmem:[#allocation4 + $0x3] sm:$0xff] %vm218, 0.0
          %220 = vst.msk [vmem:[#allocation4 + $0xb] sm:$0xff] %vm218, 0.0
          %s221 = scalar_lea.vmem [#allocation4], 24
          %222 = vst.msk [vmem:[%s221] sm:$0x7] %vm212, 0.0
          %223 = vst.msk [vmem:[%s221 + $0x13] sm:$0x7] %vm212, 0.0
          %224 = vst.msk [vmem:[%s221 + $0x3] sm:$0xff] %vm215, 0.0
          %225 = vst.msk [vmem:[%s221 + $0xb] sm:$0xff] %vm215, 0.0
          %226 = vst.msk [vmem:[%s221 + $0x3] sm:$0xff] %vm218, 0.0
          %227 = vst.msk [vmem:[%s221 + $0xb] sm:$0xff] %vm218, 0.0
          %230 = vrot.lane.b32.xlu0 %v208, 3
          %v231 = vpop.permute.xlu0 %230
          %232 = vrot.lane.b32.xlu0 %v209, 3
          %v233 = vpop.permute.xlu0 %232
          %vm236 = vcmask 154648
          %237 = vst.msk [vmem:[#allocation4 + $0x3] sm:$0xff] %vm236, %v231
          %238 = vst.msk [vmem:[#allocation4 + $0xb] sm:$0xff] %vm236, %v233
          %241 = vrot.lane.b32.xlu0 %v210, 3
          %v242 = vpop.permute.xlu0 %241
          %243 = vrot.lane.b32.xlu0 %v211, 3
          %v244 = vpop.permute.xlu0 %243
          %247 = vst.msk [vmem:[%s221 + $0x3] sm:$0xff] %vm236, %v242
          %248 = vst.msk [vmem:[%s221 + $0xb] sm:$0xff] %vm236, %v244
          %v249 = vld [vmem:[#allocation4] sm:$0xff]
          %v250 = vld [vmem:[#allocation4 + $0x8] sm:$0xff]
          %v251 = vld [vmem:[#allocation4 + $0x10] sm:$0x3f]
          %s252 = sld [smem:[#allocation6]]
          %v253 = vstv %s252
          %v254 = vmul.f32 %v253, %v249
          %v255 = vmul.f32 %v253, %v250
          %v256 = vadd.f32 %v254, 0.0
          %v257 = vadd.f32 %v255, 0.0
          %s258 = sld [smem:[#allocation6 + $0x7]]
          %v259 = vstv %s258
          %v260 = vmul.f32 %v259, %v249
          %v261 = vmul.f32 %v259, %v250
          %v262 = vmul.f32 %v259, %v251
          %vm266 = vcmask 1046528
          %v267 = vrot.slane %v260, 1
          %v268 = vrot.slane %v261, 1
          %v269 = vsel %vm266, %v267, %v268
          %v270 = vrot.slane %v262, 1
          %v271 = vsel %vm266, %v268, %v270
          %v274 = vadd.f32 %v256, %v269
          %v275 = vadd.f32 %v257, %v271
          %s276 = sld [smem:[#allocation6 + $0xe]]
          %v277 = vstv %s276
          %v278 = vmul.f32 %v277, %v249
          %v279 = vmul.f32 %v277, %v250
          %v280 = vmul.f32 %v277, %v251
          %vm284 = vcmask 1045504
          %v285 = vrot.slane %v278, 2
          %v286 = vrot.slane %v279, 2
          %v287 = vsel %vm284, %v285, %v286
          %v288 = vrot.slane %v280, 2
          %v289 = vsel %vm284, %v286, %v288
          %v292 = vadd.f32 %v274, %v287
          %v293 = vadd.f32 %v275, %v289
          %s294 = sld [smem:[#allocation6 + $0x15]]
          %v295 = vstv %s294
          %v296 = vmul.f32 %v295, %v249
          %v297 = vmul.f32 %v295, %v250
          %v298 = vmul.f32 %v295, %v251
          %vm302 = vcmask 1044480
          %v303 = vrot.slane %v296, 3
          %v304 = vrot.slane %v297, 3
          %v305 = vsel %vm302, %v303, %v304
          %v306 = vrot.slane %v298, 3
          %v307 = vsel %vm302, %v304, %v306
          %v310 = vadd.f32 %v292, %v305
          %v311 = vadd.f32 %v293, %v307
          %s312 = sld [smem:[#allocation6 + $0x1c]]
          %v313 = vstv %s312
          %v314 = vmul.f32 %v313, %v249
          %v315 = vmul.f32 %v313, %v250
          %v316 = vmul.f32 %v313, %v251
          %vm320 = vcmask 1043456
          %v321 = vrot.slane %v314, 4
          %v322 = vrot.slane %v315, 4
          %v323 = vsel %vm320, %v321, %v322
          %v324 = vrot.slane %v316, 4
          %v325 = vsel %vm320, %v322, %v324
          %v328 = vadd.f32 %v310, %v323
          %v329 = vadd.f32 %v311, %v325
          %s330 = sld [smem:[#allocation6 + $0x23]]
          %v331 = vstv %s330
          %v332 = vmul.f32 %v331, %v249
          %v333 = vmul.f32 %v331, %v250
          %v334 = vmul.f32 %v331, %v251
          %vm338 = vcmask 1042432
          %v339 = vrot.slane %v332, 5
          %v340 = vrot.slane %v333, 5
          %v341 = vsel %vm338, %v339, %v340
          %v342 = vrot.slane %v334, 5
          %v343 = vsel %vm338, %v340, %v342
          %v346 = vadd.f32 %v328, %v341
          %v347 = vadd.f32 %v329, %v343
          %s348 = sld [smem:[#allocation6 + $0x2a]]
          %v349 = vstv %s348
          %v350 = vmul.f32 %v349, %v249
          %v351 = vmul.f32 %v349, %v250
          %v352 = vmul.f32 %v349, %v251
          %vm356 = vcmask 1041408
          %v357 = vrot.slane %v350, 6
          %v358 = vrot.slane %v351, 6
          %v359 = vsel %vm356, %v357, %v358
          %v360 = vrot.slane %v352, 6
          %v361 = vsel %vm356, %v358, %v360
          %v364 = vadd.f32 %v346, %v359
          %v365 = vadd.f32 %v347, %v361
          %s366 = sld [smem:[#allocation6 + $0x1]]
          %v367 = vstv %s366
          %v368 = vmul.f32 %v367, %v249
          %v369 = vmul.f32 %v367, %v250
          %372 = vrot.lane.b32.xlu0 %v368, 127
          %v373 = vpop.permute.xlu0 %372
          %374 = vrot.lane.b32.xlu0 %v369, 127
          %v375 = vpop.permute.xlu0 %374
          %v378 = vadd.f32 %v364, %v373
          %v379 = vadd.f32 %v365, %v375
          %s380 = sld [smem:[#allocation6 + $0x8]]
          %v381 = vstv %s380
          %v382 = vmul.f32 %v381, %v249
          %v383 = vmul.f32 %v381, %v250
          %v384 = vmul.f32 %v381, %v251
          %v388 = vrot.slane %v382, 1
          %v389 = vrot.slane %v383, 1
          %v390 = vsel %vm266, %v388, %v389
          %v391 = vrot.slane %v384, 1
          %v392 = vsel %vm266, %v389, %v391
          %393 = vrot.lane.b32.xlu0 %v390, 127
          %v394 = vpop.permute.xlu0 %393
          %395 = vrot.lane.b32.xlu0 %v392, 127
          %v396 = vpop.permute.xlu0 %395
          %v399 = vadd.f32 %v378, %v394
          %v400 = vadd.f32 %v379, %v396
          %s401 = sld [smem:[#allocation6 + $0xf]]
          %v402 = vstv %s401
          %v403 = vmul.f32 %v402, %v249
          %v404 = vmul.f32 %v402, %v250
          %v405 = vmul.f32 %v402, %v251
          %v409 = vrot.slane %v403, 2
          %v410 = vrot.slane %v404, 2
          %v411 = vsel %vm284, %v409, %v410
          %v412 = vrot.slane %v405, 2
          %v413 = vsel %vm284, %v410, %v412
          %414 = vrot.lane.b32.xlu0 %v411, 127
          %v415 = vpop.permute.xlu0 %414
          %416 = vrot.lane.b32.xlu0 %v413, 127
          %v417 = vpop.permute.xlu0 %416
          %v420 = vadd.f32 %v399, %v415
          %v421 = vadd.f32 %v400, %v417
          %s422 = sld [smem:[#allocation6 + $0x16]]
          %v423 = vstv %s422
          %v424 = vmul.f32 %v423, %v249
          %v425 = vmul.f32 %v423, %v250
          %v426 = vmul.f32 %v423, %v251
          %v430 = vrot.slane %v424, 3
          %v431 = vrot.slane %v425, 3
          %v432 = vsel %vm302, %v430, %v431
          %v433 = vrot.slane %v426, 3
          %v434 = vsel %vm302, %v431, %v433
          %435 = vrot.lane.b32.xlu0 %v432, 127
          %v436 = vpop.permute.xlu0 %435
          %437 = vrot.lane.b32.xlu0 %v434, 127
          %v438 = vpop.permute.xlu0 %437
          %v441 = vadd.f32 %v420, %v436
          %v442 = vadd.f32 %v421, %v438
          %s443 = sld [smem:[#allocation6 + $0x1d]]
          %v444 = vstv %s443
          %v445 = vmul.f32 %v444, %v249
          %v446 = vmul.f32 %v444, %v250
          %v447 = vmul.f32 %v444, %v251
          %v451 = vrot.slane %v445, 4
          %v452 = vrot.slane %v446, 4
          %v453 = vsel %vm320, %v451, %v452
          %v454 = vrot.slane %v447, 4
          %v455 = vsel %vm320, %v452, %v454
          %456 = vrot.lane.b32.xlu0 %v453, 127
          %v457 = vpop.permute.xlu0 %456
          %458 = vrot.lane.b32.xlu0 %v455, 127
          %v459 = vpop.permute.xlu0 %458
          %v462 = vadd.f32 %v441, %v457
          %v463 = vadd.f32 %v442, %v459
          %s464 = sld [smem:[#allocation6 + $0x24]]
          %v465 = vstv %s464
          %v466 = vmul.f32 %v465, %v249
          %v467 = vmul.f32 %v465, %v250
          %v468 = vmul.f32 %v465, %v251
          %v472 = vrot.slane %v466, 5
          %v473 = vrot.slane %v467, 5
          %v474 = vsel %vm338, %v472, %v473
          %v475 = vrot.slane %v468, 5
          %v476 = vsel %vm338, %v473, %v475
          %477 = vrot.lane.b32.xlu0 %v474, 127
          %v478 = vpop.permute.xlu0 %477
          %479 = vrot.lane.b32.xlu0 %v476, 127
          %v480 = vpop.permute.xlu0 %479
          %v483 = vadd.f32 %v462, %v478
          %v484 = vadd.f32 %v463, %v480
          %s485 = sld [smem:[#allocation6 + $0x2b]]
          %v486 = vstv %s485
          %v487 = vmul.f32 %v486, %v249
          %v488 = vmul.f32 %v486, %v250
          %v489 = vmul.f32 %v486, %v251
          %v493 = vrot.slane %v487, 6
          %v494 = vrot.slane %v488, 6
          %v495 = vsel %vm356, %v493, %v494
          %v496 = vrot.slane %v489, 6
          %v497 = vsel %vm356, %v494, %v496
          %498 = vrot.lane.b32.xlu0 %v495, 127
          %v499 = vpop.permute.xlu0 %498
          %500 = vrot.lane.b32.xlu0 %v497, 127
          %v501 = vpop.permute.xlu0 %500
          %v504 = vadd.f32 %v483, %v499
          %v505 = vadd.f32 %v484, %v501
          %s506 = sld [smem:[#allocation6 + $0x2]]
          %v507 = vstv %s506
          %v508 = vmul.f32 %v507, %v249
          %v509 = vmul.f32 %v507, %v250
          %512 = vrot.lane.b32.xlu0 %v508, 126
          %v513 = vpop.permute.xlu0 %512
          %514 = vrot.lane.b32.xlu0 %v509, 126
          %v515 = vpop.permute.xlu0 %514
          %v518 = vadd.f32 %v504, %v513
          %v519 = vadd.f32 %v505, %v515
          %s520 = sld [smem:[#allocation6 + $0x9]]
          %v521 = vstv %s520
          %v522 = vmul.f32 %v521, %v249
          %v523 = vmul.f32 %v521, %v250
          %v524 = vmul.f32 %v521, %v251
          %v528 = vrot.slane %v522, 1
          %v529 = vrot.slane %v523, 1
          %v530 = vsel %vm266, %v528, %v529
          %v531 = vrot.slane %v524, 1
          %v532 = vsel %vm266, %v529, %v531
          %533 = vrot.lane.b32.xlu0 %v530, 126
          %v534 = vpop.permute.xlu0 %533
          %535 = vrot.lane.b32.xlu0 %v532, 126
          %v536 = vpop.permute.xlu0 %535
          %v539 = vadd.f32 %v518, %v534
          %v540 = vadd.f32 %v519, %v536
          %s541 = sld [smem:[#allocation6 + $0x10]]
          %v542 = vstv %s541
          %v543 = vmul.f32 %v542, %v249
          %v544 = vmul.f32 %v542, %v250
          %v545 = vmul.f32 %v542, %v251
          %v549 = vrot.slane %v543, 2
          %v550 = vrot.slane %v544, 2
          %v551 = vsel %vm284, %v549, %v550
          %v552 = vrot.slane %v545, 2
          %v553 = vsel %vm284, %v550, %v552
          %554 = vrot.lane.b32.xlu0 %v551, 126
          %v555 = vpop.permute.xlu0 %554
          %556 = vrot.lane.b32.xlu0 %v553, 126
          %v557 = vpop.permute.xlu0 %556
          %v560 = vadd.f32 %v539, %v555
          %v561 = vadd.f32 %v540, %v557
          %s562 = sld [smem:[#allocation6 + $0x17]]
          %v563 = vstv %s562
          %v564 = vmul.f32 %v563, %v249
          %v565 = vmul.f32 %v563, %v250
          %v566 = vmul.f32 %v563, %v251
          %v570 = vrot.slane %v564, 3
          %v571 = vrot.slane %v565, 3
          %v572 = vsel %vm302, %v570, %v571
          %v573 = vrot.slane %v566, 3
          %v574 = vsel %vm302, %v571, %v573
          %575 = vrot.lane.b32.xlu0 %v572, 126
          %v576 = vpop.permute.xlu0 %575
          %577 = vrot.lane.b32.xlu0 %v574, 126
          %v578 = vpop.permute.xlu0 %577
          %v581 = vadd.f32 %v560, %v576
          %v582 = vadd.f32 %v561, %v578
          %s583 = sld [smem:[#allocation6 + $0x1e]]
          %v584 = vstv %s583
          %v585 = vmul.f32 %v584, %v249
          %v586 = vmul.f32 %v584, %v250
          %v587 = vmul.f32 %v584, %v251
          %v591 = vrot.slane %v585, 4
          %v592 = vrot.slane %v586, 4
          %v593 = vsel %vm320, %v591, %v592
          %v594 = vrot.slane %v587, 4
          %v595 = vsel %vm320, %v592, %v594
          %596 = vrot.lane.b32.xlu0 %v593, 126
          %v597 = vpop.permute.xlu0 %596
          %598 = vrot.lane.b32.xlu0 %v595, 126
          %v599 = vpop.permute.xlu0 %598
          %v602 = vadd.f32 %v581, %v597
          %v603 = vadd.f32 %v582, %v599
          %s604 = sld [smem:[#allocation6 + $0x25]]
          %v605 = vstv %s604
          %v606 = vmul.f32 %v605, %v249
          %v607 = vmul.f32 %v605, %v250
          %v608 = vmul.f32 %v605, %v251
          %v612 = vrot.slane %v606, 5
          %v613 = vrot.slane %v607, 5
          %v614 = vsel %vm338, %v612, %v613
          %v615 = vrot.slane %v608, 5
          %v616 = vsel %vm338, %v613, %v615
          %617 = vrot.lane.b32.xlu0 %v614, 126
          %v618 = vpop.permute.xlu0 %617
          %619 = vrot.lane.b32.xlu0 %v616, 126
          %v620 = vpop.permute.xlu0 %619
          %v623 = vadd.f32 %v602, %v618
          %v624 = vadd.f32 %v603, %v620
          %s625 = sld [smem:[#allocation6 + $0x2c]]
          %v626 = vstv %s625
          %v627 = vmul.f32 %v626, %v249
          %v628 = vmul.f32 %v626, %v250
          %v629 = vmul.f32 %v626, %v251
          %v633 = vrot.slane %v627, 6
          %v634 = vrot.slane %v628, 6
          %v635 = vsel %vm356, %v633, %v634
          %v636 = vrot.slane %v629, 6
          %v637 = vsel %vm356, %v634, %v636
          %638 = vrot.lane.b32.xlu0 %v635, 126
          %v639 = vpop.permute.xlu0 %638
          %640 = vrot.lane.b32.xlu0 %v637, 126
          %v641 = vpop.permute.xlu0 %640
          %v644 = vadd.f32 %v623, %v639
          %v645 = vadd.f32 %v624, %v641
          %s646 = sld [smem:[#allocation6 + $0x3]]
          %v647 = vstv %s646
          %v648 = vmul.f32 %v647, %v249
          %v649 = vmul.f32 %v647, %v250
          %652 = vrot.lane.b32.xlu0 %v648, 125
          %v653 = vpop.permute.xlu0 %652
          %654 = vrot.lane.b32.xlu0 %v649, 125
          %v655 = vpop.permute.xlu0 %654
          %v658 = vadd.f32 %v644, %v653
          %v659 = vadd.f32 %v645, %v655
          %s660 = sld [smem:[#allocation6 + $0xa]]
          %v661 = vstv %s660
          %v662 = vmul.f32 %v661, %v249
          %v663 = vmul.f32 %v661, %v250
          %v664 = vmul.f32 %v661, %v251
          %v668 = vrot.slane %v662, 1
          %v669 = vrot.slane %v663, 1
          %v670 = vsel %vm266, %v668, %v669
          %v671 = vrot.slane %v664, 1
          %v672 = vsel %vm266, %v669, %v671
          %673 = vrot.lane.b32.xlu0 %v670, 125
          %v674 = vpop.permute.xlu0 %673
          %675 = vrot.lane.b32.xlu0 %v672, 125
          %v676 = vpop.permute.xlu0 %675
          %v679 = vadd.f32 %v658, %v674
          %v680 = vadd.f32 %v659, %v676
          %s681 = sld [smem:[#allocation6 + $0x11]]
          %v682 = vstv %s681
          %v683 = vmul.f32 %v682, %v249
          %v684 = vmul.f32 %v682, %v250
          %v685 = vmul.f32 %v682, %v251
          %v689 = vrot.slane %v683, 2
          %v690 = vrot.slane %v684, 2
          %v691 = vsel %vm284, %v689, %v690
          %v692 = vrot.slane %v685, 2
          %v693 = vsel %vm284, %v690, %v692
          %694 = vrot.lane.b32.xlu0 %v691, 125
          %v695 = vpop.permute.xlu0 %694
          %696 = vrot.lane.b32.xlu0 %v693, 125
          %v697 = vpop.permute.xlu0 %696
          %v700 = vadd.f32 %v679, %v695
          %v701 = vadd.f32 %v680, %v697
          %s702 = sld [smem:[#allocation6 + $0x18]]
          %v703 = vstv %s702
          %v704 = vmul.f32 %v703, %v249
          %v705 = vmul.f32 %v703, %v250
          %v706 = vmul.f32 %v703, %v251
          %v710 = vrot.slane %v704, 3
          %v711 = vrot.slane %v705, 3
          %v712 = vsel %vm302, %v710, %v711
          %v713 = vrot.slane %v706, 3
          %v714 = vsel %vm302, %v711, %v713
          %715 = vrot.lane.b32.xlu0 %v712, 125
          %v716 = vpop.permute.xlu0 %715
          %717 = vrot.lane.b32.xlu0 %v714, 125
          %v718 = vpop.permute.xlu0 %717
          %v721 = vadd.f32 %v700, %v716
          %v722 = vadd.f32 %v701, %v718
          %s723 = sld [smem:[#allocation6 + $0x1f]]
          %v724 = vstv %s723
          %v725 = vmul.f32 %v724, %v249
          %v726 = vmul.f32 %v724, %v250
          %v727 = vmul.f32 %v724, %v251
          %v731 = vrot.slane %v725, 4
          %v732 = vrot.slane %v726, 4
          %v733 = vsel %vm320, %v731, %v732
          %v734 = vrot.slane %v727, 4
          %v735 = vsel %vm320, %v732, %v734
          %736 = vrot.lane.b32.xlu0 %v733, 125
          %v737 = vpop.permute.xlu0 %736
          %738 = vrot.lane.b32.xlu0 %v735, 125
          %v739 = vpop.permute.xlu0 %738
          %v742 = vadd.f32 %v721, %v737
          %v743 = vadd.f32 %v722, %v739
          %s744 = sld [smem:[#allocation6 + $0x26]]
          %v745 = vstv %s744
          %v746 = vmul.f32 %v745, %v249
          %v747 = vmul.f32 %v745, %v250
          %v748 = vmul.f32 %v745, %v251
          %v752 = vrot.slane %v746, 5
          %v753 = vrot.slane %v747, 5
          %v754 = vsel %vm338, %v752, %v753
          %v755 = vrot.slane %v748, 5
          %v756 = vsel %vm338, %v753, %v755
          %757 = vrot.lane.b32.xlu0 %v754, 125
          %v758 = vpop.permute.xlu0 %757
          %759 = vrot.lane.b32.xlu0 %v756, 125
          %v760 = vpop.permute.xlu0 %759
          %v763 = vadd.f32 %v742, %v758
          %v764 = vadd.f32 %v743, %v760
          %s765 = sld [smem:[#allocation6 + $0x2d]]
          %v766 = vstv %s765
          %v767 = vmul.f32 %v766, %v249
          %v768 = vmul.f32 %v766, %v250
          %v769 = vmul.f32 %v766, %v251
          %v773 = vrot.slane %v767, 6
          %v774 = vrot.slane %v768, 6
          %v775 = vsel %vm356, %v773, %v774
          %v776 = vrot.slane %v769, 6
          %v777 = vsel %vm356, %v774, %v776
          %778 = vrot.lane.b32.xlu0 %v775, 125
          %v779 = vpop.permute.xlu0 %778
          %780 = vrot.lane.b32.xlu0 %v777, 125
          %v781 = vpop.permute.xlu0 %780
          %v784 = vadd.f32 %v763, %v779
          %v785 = vadd.f32 %v764, %v781
          %s786 = sld [smem:[#allocation6 + $0x4]]
          %v787 = vstv %s786
          %v788 = vmul.f32 %v787, %v249
          %v789 = vmul.f32 %v787, %v250
          %792 = vrot.lane.b32.xlu0 %v788, 124
          %v793 = vpop.permute.xlu0 %792
          %794 = vrot.lane.b32.xlu0 %v789, 124
          %v795 = vpop.permute.xlu0 %794
          %v798 = vadd.f32 %v784, %v793
          %v799 = vadd.f32 %v785, %v795
          %s800 = sld [smem:[#allocation6 + $0xb]]
          %v801 = vstv %s800
          %v802 = vmul.f32 %v801, %v249
          %v803 = vmul.f32 %v801, %v250
          %v804 = vmul.f32 %v801, %v251
          %v808 = vrot.slane %v802, 1
          %v809 = vrot.slane %v803, 1
          %v810 = vsel %vm266, %v808, %v809
          %v811 = vrot.slane %v804, 1
          %v812 = vsel %vm266, %v809, %v811
          %813 = vrot.lane.b32.xlu0 %v810, 124
          %v814 = vpop.permute.xlu0 %813
          %815 = vrot.lane.b32.xlu0 %v812, 124
          %v816 = vpop.permute.xlu0 %815
          %v819 = vadd.f32 %v798, %v814
          %v820 = vadd.f32 %v799, %v816
          %s821 = sld [smem:[#allocation6 + $0x12]]
          %v822 = vstv %s821
          %v823 = vmul.f32 %v822, %v249
          %v824 = vmul.f32 %v822, %v250
          %v825 = vmul.f32 %v822, %v251
          %v829 = vrot.slane %v823, 2
          %v830 = vrot.slane %v824, 2
          %v831 = vsel %vm284, %v829, %v830
          %v832 = vrot.slane %v825, 2
          %v833 = vsel %vm284, %v830, %v832
          %834 = vrot.lane.b32.xlu0 %v831, 124
          %v835 = vpop.permute.xlu0 %834
          %836 = vrot.lane.b32.xlu0 %v833, 124
          %v837 = vpop.permute.xlu0 %836
          %v840 = vadd.f32 %v819, %v835
          %v841 = vadd.f32 %v820, %v837
          %s842 = sld [smem:[#allocation6 + $0x19]]
          %v843 = vstv %s842
          %v844 = vmul.f32 %v843, %v249
          %v845 = vmul.f32 %v843, %v250
          %v846 = vmul.f32 %v843, %v251
          %v850 = vrot.slane %v844, 3
          %v851 = vrot.slane %v845, 3
          %v852 = vsel %vm302, %v850, %v851
          %v853 = vrot.slane %v846, 3
          %v854 = vsel %vm302, %v851, %v853
          %855 = vrot.lane.b32.xlu0 %v852, 124
          %v856 = vpop.permute.xlu0 %855
          %857 = vrot.lane.b32.xlu0 %v854, 124
          %v858 = vpop.permute.xlu0 %857
          %v861 = vadd.f32 %v840, %v856
          %v862 = vadd.f32 %v841, %v858
          %s863 = sld [smem:[#allocation6 + $0x20]]
          %v864 = vstv %s863
          %v865 = vmul.f32 %v864, %v249
          %v866 = vmul.f32 %v864, %v250
          %v867 = vmul.f32 %v864, %v251
          %v871 = vrot.slane %v865, 4
          %v872 = vrot.slane %v866, 4
          %v873 = vsel %vm320, %v871, %v872
          %v874 = vrot.slane %v867, 4
          %v875 = vsel %vm320, %v872, %v874
          %876 = vrot.lane.b32.xlu0 %v873, 124
          %v877 = vpop.permute.xlu0 %876
          %878 = vrot.lane.b32.xlu0 %v875, 124
          %v879 = vpop.permute.xlu0 %878
          %v882 = vadd.f32 %v861, %v877
          %v883 = vadd.f32 %v862, %v879
          %s884 = sld [smem:[#allocation6 + $0x27]]
          %v885 = vstv %s884
          %v886 = vmul.f32 %v885, %v249
          %v887 = vmul.f32 %v885, %v250
          %v888 = vmul.f32 %v885, %v251
          %v892 = vrot.slane %v886, 5
          %v893 = vrot.slane %v887, 5
          %v894 = vsel %vm338, %v892, %v893
          %v895 = vrot.slane %v888, 5
          %v896 = vsel %vm338, %v893, %v895
          %897 = vrot.lane.b32.xlu0 %v894, 124
          %v898 = vpop.permute.xlu0 %897
          %899 = vrot.lane.b32.xlu0 %v896, 124
          %v900 = vpop.permute.xlu0 %899
          %v903 = vadd.f32 %v882, %v898
          %v904 = vadd.f32 %v883, %v900
          %s905 = sld [smem:[#allocation6 + $0x2e]]
          %v906 = vstv %s905
          %v907 = vmul.f32 %v906, %v249
          %v908 = vmul.f32 %v906, %v250
          %v909 = vmul.f32 %v906, %v251
          %v913 = vrot.slane %v907, 6
          %v914 = vrot.slane %v908, 6
          %v915 = vsel %vm356, %v913, %v914
          %v916 = vrot.slane %v909, 6
          %v917 = vsel %vm356, %v914, %v916
          %918 = vrot.lane.b32.xlu0 %v915, 124
          %v919 = vpop.permute.xlu0 %918
          %920 = vrot.lane.b32.xlu0 %v917, 124
          %v921 = vpop.permute.xlu0 %920
          %v924 = vadd.f32 %v903, %v919
          %v925 = vadd.f32 %v904, %v921
          %s926 = sld [smem:[#allocation6 + $0x5]]
          %v927 = vstv %s926
          %v928 = vmul.f32 %v927, %v249
          %v929 = vmul.f32 %v927, %v250
          %932 = vrot.lane.b32.xlu0 %v928, 123
          %v933 = vpop.permute.xlu0 %932
          %934 = vrot.lane.b32.xlu0 %v929, 123
          %v935 = vpop.permute.xlu0 %934
          %v938 = vadd.f32 %v924, %v933
          %v939 = vadd.f32 %v925, %v935
          %s940 = sld [smem:[#allocation6 + $0xc]]
          %v941 = vstv %s940
          %v942 = vmul.f32 %v941, %v249
          %v943 = vmul.f32 %v941, %v250
          %v944 = vmul.f32 %v941, %v251
          %v948 = vrot.slane %v942, 1
          %v949 = vrot.slane %v943, 1
          %v950 = vsel %vm266, %v948, %v949
          %v951 = vrot.slane %v944, 1
          %v952 = vsel %vm266, %v949, %v951
          %953 = vrot.lane.b32.xlu0 %v950, 123
          %v954 = vpop.permute.xlu0 %953
          %955 = vrot.lane.b32.xlu0 %v952, 123
          %v956 = vpop.permute.xlu0 %955
          %v959 = vadd.f32 %v938, %v954
          %v960 = vadd.f32 %v939, %v956
          %s961 = sld [smem:[#allocation6 + $0x13]]
          %v962 = vstv %s961
          %v963 = vmul.f32 %v962, %v249
          %v964 = vmul.f32 %v962, %v250
          %v965 = vmul.f32 %v962, %v251
          %v969 = vrot.slane %v963, 2
          %v970 = vrot.slane %v964, 2
          %v971 = vsel %vm284, %v969, %v970
          %v972 = vrot.slane %v965, 2
          %v973 = vsel %vm284, %v970, %v972
          %974 = vrot.lane.b32.xlu0 %v971, 123
          %v975 = vpop.permute.xlu0 %974
          %976 = vrot.lane.b32.xlu0 %v973, 123
          %v977 = vpop.permute.xlu0 %976
          %v980 = vadd.f32 %v959, %v975
          %v981 = vadd.f32 %v960, %v977
          %s982 = sld [smem:[#allocation6 + $0x1a]]
          %v983 = vstv %s982
          %v984 = vmul.f32 %v983, %v249
          %v985 = vmul.f32 %v983, %v250
          %v986 = vmul.f32 %v983, %v251
          %v990 = vrot.slane %v984, 3
          %v991 = vrot.slane %v985, 3
          %v992 = vsel %vm302, %v990, %v991
          %v993 = vrot.slane %v986, 3
          %v994 = vsel %vm302, %v991, %v993
          %995 = vrot.lane.b32.xlu0 %v992, 123
          %v996 = vpop.permute.xlu0 %995
          %997 = vrot.lane.b32.xlu0 %v994, 123
          %v998 = vpop.permute.xlu0 %997
          %v1001 = vadd.f32 %v980, %v996
          %v1002 = vadd.f32 %v981, %v998
          %s1003 = sld [smem:[#allocation6 + $0x21]]
          %v1004 = vstv %s1003
          %v1005 = vmul.f32 %v1004, %v249
          %v1006 = vmul.f32 %v1004, %v250
          %v1007 = vmul.f32 %v1004, %v251
          %v1011 = vrot.slane %v1005, 4
          %v1012 = vrot.slane %v1006, 4
          %v1013 = vsel %vm320, %v1011, %v1012
          %v1014 = vrot.slane %v1007, 4
          %v1015 = vsel %vm320, %v1012, %v1014
          %1016 = vrot.lane.b32.xlu0 %v1013, 123
          %v1017 = vpop.permute.xlu0 %1016
          %1018 = vrot.lane.b32.xlu0 %v1015, 123
          %v1019 = vpop.permute.xlu0 %1018
          %v1022 = vadd.f32 %v1001, %v1017
          %v1023 = vadd.f32 %v1002, %v1019
          %s1024 = sld [smem:[#allocation6 + $0x28]]
          %v1025 = vstv %s1024
          %v1026 = vmul.f32 %v1025, %v249
          %v1027 = vmul.f32 %v1025, %v250
          %v1028 = vmul.f32 %v1025, %v251
          %v1032 = vrot.slane %v1026, 5
          %v1033 = vrot.slane %v1027, 5
          %v1034 = vsel %vm338, %v1032, %v1033
          %v1035 = vrot.slane %v1028, 5
          %v1036 = vsel %vm338, %v1033, %v1035
          %1037 = vrot.lane.b32.xlu0 %v1034, 123
          %v1038 = vpop.permute.xlu0 %1037
          %1039 = vrot.lane.b32.xlu0 %v1036, 123
          %v1040 = vpop.permute.xlu0 %1039
          %v1043 = vadd.f32 %v1022, %v1038
          %v1044 = vadd.f32 %v1023, %v1040
          %s1045 = sld [smem:[#allocation6 + $0x2f]]
          %v1046 = vstv %s1045
          %v1047 = vmul.f32 %v1046, %v249
          %v1048 = vmul.f32 %v1046, %v250
          %v1049 = vmul.f32 %v1046, %v251
          %v1053 = vrot.slane %v1047, 6
          %v1054 = vrot.slane %v1048, 6
          %v1055 = vsel %vm356, %v1053, %v1054
          %v1056 = vrot.slane %v1049, 6
          %v1057 = vsel %vm356, %v1054, %v1056
          %1058 = vrot.lane.b32.xlu0 %v1055, 123
          %v1059 = vpop.permute.xlu0 %1058
          %1060 = vrot.lane.b32.xlu0 %v1057, 123
          %v1061 = vpop.permute.xlu0 %1060
          %v1064 = vadd.f32 %v1043, %v1059
          %v1065 = vadd.f32 %v1044, %v1061
          %s1066 = sld [smem:[#allocation6 + $0x6]]
          %v1067 = vstv %s1066
          %v1068 = vmul.f32 %v1067, %v249
          %v1069 = vmul.f32 %v1067, %v250
          %1072 = vrot.lane.b32.xlu0 %v1068, 122
          %v1073 = vpop.permute.xlu0 %1072
          %1074 = vrot.lane.b32.xlu0 %v1069, 122
          %v1075 = vpop.permute.xlu0 %1074
          %v1078 = vadd.f32 %v1064, %v1073
          %v1079 = vadd.f32 %v1065, %v1075
          %s1080 = sld [smem:[#allocation6 + $0xd]]
          %v1081 = vstv %s1080
          %v1082 = vmul.f32 %v1081, %v249
          %v1083 = vmul.f32 %v1081, %v250
          %v1084 = vmul.f32 %v1081, %v251
          %v1088 = vrot.slane %v1082, 1
          %v1089 = vrot.slane %v1083, 1
          %v1090 = vsel %vm266, %v1088, %v1089
          %v1091 = vrot.slane %v1084, 1
          %v1092 = vsel %vm266, %v1089, %v1091
          %1093 = vrot.lane.b32.xlu0 %v1090, 122
          %v1094 = vpop.permute.xlu0 %1093
          %1095 = vrot.lane.b32.xlu0 %v1092, 122
          %v1096 = vpop.permute.xlu0 %1095
          %v1099 = vadd.f32 %v1078, %v1094
          %v1100 = vadd.f32 %v1079, %v1096
          %s1101 = sld [smem:[#allocation6 + $0x14]]
          %v1102 = vstv %s1101
          %v1103 = vmul.f32 %v1102, %v249
          %v1104 = vmul.f32 %v1102, %v250
          %v1105 = vmul.f32 %v1102, %v251
          %v1109 = vrot.slane %v1103, 2
          %v1110 = vrot.slane %v1104, 2
          %v1111 = vsel %vm284, %v1109, %v1110
          %v1112 = vrot.slane %v1105, 2
          %v1113 = vsel %vm284, %v1110, %v1112
          %1114 = vrot.lane.b32.xlu0 %v1111, 122
          %v1115 = vpop.permute.xlu0 %1114
          %1116 = vrot.lane.b32.xlu0 %v1113, 122
          %v1117 = vpop.permute.xlu0 %1116
          %v1120 = vadd.f32 %v1099, %v1115
          %v1121 = vadd.f32 %v1100, %v1117
          %s1122 = sld [smem:[#allocation6 + $0x1b]]
          %v1123 = vstv %s1122
          %v1124 = vmul.f32 %v1123, %v249
          %v1125 = vmul.f32 %v1123, %v250
          %v1126 = vmul.f32 %v1123, %v251
          %v1130 = vrot.slane %v1124, 3
          %v1131 = vrot.slane %v1125, 3
          %v1132 = vsel %vm302, %v1130, %v1131
          %v1133 = vrot.slane %v1126, 3
          %v1134 = vsel %vm302, %v1131, %v1133
          %1135 = vrot.lane.b32.xlu0 %v1132, 122
          %v1136 = vpop.permute.xlu0 %1135
          %1137 = vrot.lane.b32.xlu0 %v1134, 122
          %v1138 = vpop.permute.xlu0 %1137
          %v1141 = vadd.f32 %v1120, %v1136
          %v1142 = vadd.f32 %v1121, %v1138
          %s1143 = sld [smem:[#allocation6 + $0x22]]
          %v1144 = vstv %s1143
          %v1145 = vmul.f32 %v1144, %v249
          %v1146 = vmul.f32 %v1144, %v250
          %v1147 = vmul.f32 %v1144, %v251
          %v1151 = vrot.slane %v1145, 4
          %v1152 = vrot.slane %v1146, 4
          %v1153 = vsel %vm320, %v1151, %v1152
          %v1154 = vrot.slane %v1147, 4
          %v1155 = vsel %vm320, %v1152, %v1154
          %1156 = vrot.lane.b32.xlu0 %v1153, 122
          %v1157 = vpop.permute.xlu0 %1156
          %1158 = vrot.lane.b32.xlu0 %v1155, 122
          %v1159 = vpop.permute.xlu0 %1158
          %v1162 = vadd.f32 %v1141, %v1157
          %v1163 = vadd.f32 %v1142, %v1159
          %s1164 = sld [smem:[#allocation6 + $0x29]]
          %v1165 = vstv %s1164
          %v1166 = vmul.f32 %v1165, %v249
          %v1167 = vmul.f32 %v1165, %v250
          %v1168 = vmul.f32 %v1165, %v251
          %v1172 = vrot.slane %v1166, 5
          %v1173 = vrot.slane %v1167, 5
          %v1174 = vsel %vm338, %v1172, %v1173
          %v1175 = vrot.slane %v1168, 5
          %v1176 = vsel %vm338, %v1173, %v1175
          %1177 = vrot.lane.b32.xlu0 %v1174, 122
          %v1178 = vpop.permute.xlu0 %1177
          %1179 = vrot.lane.b32.xlu0 %v1176, 122
          %v1180 = vpop.permute.xlu0 %1179
          %v1183 = vadd.f32 %v1162, %v1178
          %v1184 = vadd.f32 %v1163, %v1180
          %s1185 = sld [smem:[#allocation6 + $0x30]]
          %v1186 = vstv %s1185
          %v1187 = vmul.f32 %v1186, %v249
          %v1188 = vmul.f32 %v1186, %v250
          %v1189 = vmul.f32 %v1186, %v251
          %v1193 = vrot.slane %v1187, 6
          %v1194 = vrot.slane %v1188, 6
          %v1195 = vsel %vm356, %v1193, %v1194
          %v1196 = vrot.slane %v1189, 6
          %v1197 = vsel %vm356, %v1194, %v1196
          %1198 = vrot.lane.b32.xlu0 %v1195, 122
          %v1199 = vpop.permute.xlu0 %1198
          %1200 = vrot.lane.b32.xlu0 %v1197, 122
          %v1201 = vpop.permute.xlu0 %1200
          %v1204 = vadd.f32 %v1183, %v1199
          %v1205 = vadd.f32 %v1184, %v1201
          %v1206 = vld [vmem:[%s221] sm:$0xff]
          %v1207 = vld [vmem:[%s221 + $0x8] sm:$0xff]
          %v1208 = vld [vmem:[%s221 + $0x10] sm:$0x3f]
          %s1209 = sld [smem:[#allocation6 + $0x31]]
          %v1210 = vstv %s1209
          %v1211 = vmul.f32 %v1210, %v1206
          %v1212 = vmul.f32 %v1210, %v1207
          %v1213 = vadd.f32 %v1204, %v1211
          %v1214 = vadd.f32 %v1205, %v1212
          %s1215 = sld [smem:[#allocation6 + $0x38]]
          %v1216 = vstv %s1215
          %v1217 = vmul.f32 %v1216, %v1206
          %v1218 = vmul.f32 %v1216, %v1207
          %v1219 = vmul.f32 %v1216, %v1208
          %v1223 = vrot.slane %v1217, 1
          %v1224 = vrot.slane %v1218, 1
          %v1225 = vsel %vm266, %v1223, %v1224
          %v1226 = vrot.slane %v1219, 1
          %v1227 = vsel %vm266, %v1224, %v1226
          %v1230 = vadd.f32 %v1213, %v1225
          %v1231 = vadd.f32 %v1214, %v1227
          %s1232 = sld [smem:[#allocation6 + $0x3f]]
          %v1233 = vstv %s1232
          %v1234 = vmul.f32 %v1233, %v1206
          %v1235 = vmul.f32 %v1233, %v1207
          %v1236 = vmul.f32 %v1233, %v1208
          %v1240 = vrot.slane %v1234, 2
          %v1241 = vrot.slane %v1235, 2
          %v1242 = vsel %vm284, %v1240, %v1241
          %v1243 = vrot.slane %v1236, 2
          %v1244 = vsel %vm284, %v1241, %v1243
          %v1247 = vadd.f32 %v1230, %v1242
          %v1248 = vadd.f32 %v1231, %v1244
          %s1249 = sld [smem:[#allocation6 + $0x46]]
          %v1250 = vstv %s1249
          %v1251 = vmul.f32 %v1250, %v1206
          %v1252 = vmul.f32 %v1250, %v1207
          %v1253 = vmul.f32 %v1250, %v1208
          %v1257 = vrot.slane %v1251, 3
          %v1258 = vrot.slane %v1252, 3
          %v1259 = vsel %vm302, %v1257, %v1258
          %v1260 = vrot.slane %v1253, 3
          %v1261 = vsel %vm302, %v1258, %v1260
          %v1264 = vadd.f32 %v1247, %v1259
          %v1265 = vadd.f32 %v1248, %v1261
          %s1266 = sld [smem:[#allocation6 + $0x4d]]
          %v1267 = vstv %s1266
          %v1268 = vmul.f32 %v1267, %v1206
          %v1269 = vmul.f32 %v1267, %v1207
          %v1270 = vmul.f32 %v1267, %v1208
          %v1274 = vrot.slane %v1268, 4
          %v1275 = vrot.slane %v1269, 4
          %v1276 = vsel %vm320, %v1274, %v1275
          %v1277 = vrot.slane %v1270, 4
          %v1278 = vsel %vm320, %v1275, %v1277
          %v1281 = vadd.f32 %v1264, %v1276
          %v1282 = vadd.f32 %v1265, %v1278
          %s1283 = sld [smem:[#allocation6 + $0x54]]
          %v1284 = vstv %s1283
          %v1285 = vmul.f32 %v1284, %v1206
          %v1286 = vmul.f32 %v1284, %v1207
          %v1287 = vmul.f32 %v1284, %v1208
          %v1291 = vrot.slane %v1285, 5
          %v1292 = vrot.slane %v1286, 5
          %v1293 = vsel %vm338, %v1291, %v1292
          %v1294 = vrot.slane %v1287, 5
          %v1295 = vsel %vm338, %v1292, %v1294
          %v1298 = vadd.f32 %v1281, %v1293
          %v1299 = vadd.f32 %v1282, %v1295
          %s1300 = sld [smem:[#allocation6 + $0x5b]]
          %v1301 = vstv %s1300
          %v1302 = vmul.f32 %v1301, %v1206
          %v1303 = vmul.f32 %v1301, %v1207
          %v1304 = vmul.f32 %v1301, %v1208
          %v1308 = vrot.slane %v1302, 6
          %v1309 = vrot.slane %v1303, 6
          %v1310 = vsel %vm356, %v1308, %v1309
          %v1311 = vrot.slane %v1304, 6
          %v1312 = vsel %vm356, %v1309, %v1311
          %v1315 = vadd.f32 %v1298, %v1310
          %v1316 = vadd.f32 %v1299, %v1312
          %s1317 = sld [smem:[#allocation6 + $0x32]]
          %v1318 = vstv %s1317
          %v1319 = vmul.f32 %v1318, %v1206
          %v1320 = vmul.f32 %v1318, %v1207
          %1323 = vrot.lane.b32.xlu0 %v1319, 127
          %v1324 = vpop.permute.xlu0 %1323
          %1325 = vrot.lane.b32.xlu0 %v1320, 127
          %v1326 = vpop.permute.xlu0 %1325
          %v1329 = vadd.f32 %v1315, %v1324
          %v1330 = vadd.f32 %v1316, %v1326
          %s1331 = sld [smem:[#allocation6 + $0x39]]
          %v1332 = vstv %s1331
          %v1333 = vmul.f32 %v1332, %v1206
          %v1334 = vmul.f32 %v1332, %v1207
          %v1335 = vmul.f32 %v1332, %v1208
          %v1339 = vrot.slane %v1333, 1
          %v1340 = vrot.slane %v1334, 1
          %v1341 = vsel %vm266, %v1339, %v1340
          %v1342 = vrot.slane %v1335, 1
          %v1343 = vsel %vm266, %v1340, %v1342
          %1344 = vrot.lane.b32.xlu0 %v1341, 127
          %v1345 = vpop.permute.xlu0 %1344
          %1346 = vrot.lane.b32.xlu0 %v1343, 127
          %v1347 = vpop.permute.xlu0 %1346
          %v1350 = vadd.f32 %v1329, %v1345
          %v1351 = vadd.f32 %v1330, %v1347
          %s1352 = sld [smem:[#allocation6 + $0x40]]
          %v1353 = vstv %s1352
          %v1354 = vmul.f32 %v1353, %v1206
          %v1355 = vmul.f32 %v1353, %v1207
          %v1356 = vmul.f32 %v1353, %v1208
          %v1360 = vrot.slane %v1354, 2
          %v1361 = vrot.slane %v1355, 2
          %v1362 = vsel %vm284, %v1360, %v1361
          %v1363 = vrot.slane %v1356, 2
          %v1364 = vsel %vm284, %v1361, %v1363
          %1365 = vrot.lane.b32.xlu0 %v1362, 127
          %v1366 = vpop.permute.xlu0 %1365
          %1367 = vrot.lane.b32.xlu0 %v1364, 127
          %v1368 = vpop.permute.xlu0 %1367
          %v1371 = vadd.f32 %v1350, %v1366
          %v1372 = vadd.f32 %v1351, %v1368
          %s1373 = sld [smem:[#allocation6 + $0x47]]
          %v1374 = vstv %s1373
          %v1375 = vmul.f32 %v1374, %v1206
          %v1376 = vmul.f32 %v1374, %v1207
          %v1377 = vmul.f32 %v1374, %v1208
          %v1381 = vrot.slane %v1375, 3
          %v1382 = vrot.slane %v1376, 3
          %v1383 = vsel %vm302, %v1381, %v1382
          %v1384 = vrot.slane %v1377, 3
          %v1385 = vsel %vm302, %v1382, %v1384
          %1386 = vrot.lane.b32.xlu0 %v1383, 127
          %v1387 = vpop.permute.xlu0 %1386
          %1388 = vrot.lane.b32.xlu0 %v1385, 127
          %v1389 = vpop.permute.xlu0 %1388
          %v1392 = vadd.f32 %v1371, %v1387
          %v1393 = vadd.f32 %v1372, %v1389
          %s1394 = sld [smem:[#allocation6 + $0x4e]]
          %v1395 = vstv %s1394
          %v1396 = vmul.f32 %v1395, %v1206
          %v1397 = vmul.f32 %v1395, %v1207
          %v1398 = vmul.f32 %v1395, %v1208
          %v1402 = vrot.slane %v1396, 4
          %v1403 = vrot.slane %v1397, 4
          %v1404 = vsel %vm320, %v1402, %v1403
          %v1405 = vrot.slane %v1398, 4
          %v1406 = vsel %vm320, %v1403, %v1405
          %1407 = vrot.lane.b32.xlu0 %v1404, 127
          %v1408 = vpop.permute.xlu0 %1407
          %1409 = vrot.lane.b32.xlu0 %v1406, 127
          %v1410 = vpop.permute.xlu0 %1409
          %v1413 = vadd.f32 %v1392, %v1408
          %v1414 = vadd.f32 %v1393, %v1410
          %s1415 = sld [smem:[#allocation6 + $0x55]]
          %v1416 = vstv %s1415
          %v1417 = vmul.f32 %v1416, %v1206
          %v1418 = vmul.f32 %v1416, %v1207
          %v1419 = vmul.f32 %v1416, %v1208
          %v1423 = vrot.slane %v1417, 5
          %v1424 = vrot.slane %v1418, 5
          %v1425 = vsel %vm338, %v1423, %v1424
          %v1426 = vrot.slane %v1419, 5
          %v1427 = vsel %vm338, %v1424, %v1426
          %1428 = vrot.lane.b32.xlu0 %v1425, 127
          %v1429 = vpop.permute.xlu0 %1428
          %1430 = vrot.lane.b32.xlu0 %v1427, 127
          %v1431 = vpop.permute.xlu0 %1430
          %v1434 = vadd.f32 %v1413, %v1429
          %v1435 = vadd.f32 %v1414, %v1431
          %s1436 = sld [smem:[#allocation6 + $0x5c]]
          %v1437 = vstv %s1436
          %v1438 = vmul.f32 %v1437, %v1206
          %v1439 = vmul.f32 %v1437, %v1207
          %v1440 = vmul.f32 %v1437, %v1208
          %v1444 = vrot.slane %v1438, 6
          %v1445 = vrot.slane %v1439, 6
          %v1446 = vsel %vm356, %v1444, %v1445
          %v1447 = vrot.slane %v1440, 6
          %v1448 = vsel %vm356, %v1445, %v1447
          %1449 = vrot.lane.b32.xlu0 %v1446, 127
          %v1450 = vpop.permute.xlu0 %1449
          %1451 = vrot.lane.b32.xlu0 %v1448, 127
          %v1452 = vpop.permute.xlu0 %1451
          %v1455 = vadd.f32 %v1434, %v1450
          %v1456 = vadd.f32 %v1435, %v1452
          %s1457 = sld [smem:[#allocation6 + $0x33]]
          %v1458 = vstv %s1457
          %v1459 = vmul.f32 %v1458, %v1206
          %v1460 = vmul.f32 %v1458, %v1207
          %1463 = vrot.lane.b32.xlu0 %v1459, 126
          %v1464 = vpop.permute.xlu0 %1463
          %1465 = vrot.lane.b32.xlu0 %v1460, 126
          %v1466 = vpop.permute.xlu0 %1465
          %v1469 = vadd.f32 %v1455, %v1464
          %v1470 = vadd.f32 %v1456, %v1466
          %s1471 = sld [smem:[#allocation6 + $0x3a]]
          %v1472 = vstv %s1471
          %v1473 = vmul.f32 %v1472, %v1206
          %v1474 = vmul.f32 %v1472, %v1207
          %v1475 = vmul.f32 %v1472, %v1208
          %v1479 = vrot.slane %v1473, 1
          %v1480 = vrot.slane %v1474, 1
          %v1481 = vsel %vm266, %v1479, %v1480
          %v1482 = vrot.slane %v1475, 1
          %v1483 = vsel %vm266, %v1480, %v1482
          %1484 = vrot.lane.b32.xlu0 %v1481, 126
          %v1485 = vpop.permute.xlu0 %1484
          %1486 = vrot.lane.b32.xlu0 %v1483, 126
          %v1487 = vpop.permute.xlu0 %1486
          %v1490 = vadd.f32 %v1469, %v1485
          %v1491 = vadd.f32 %v1470, %v1487
          %s1492 = sld [smem:[#allocation6 + $0x41]]
          %v1493 = vstv %s1492
          %v1494 = vmul.f32 %v1493, %v1206
          %v1495 = vmul.f32 %v1493, %v1207
          %v1496 = vmul.f32 %v1493, %v1208
          %v1500 = vrot.slane %v1494, 2
          %v1501 = vrot.slane %v1495, 2
          %v1502 = vsel %vm284, %v1500, %v1501
          %v1503 = vrot.slane %v1496, 2
          %v1504 = vsel %vm284, %v1501, %v1503
          %1505 = vrot.lane.b32.xlu0 %v1502, 126
          %v1506 = vpop.permute.xlu0 %1505
          %1507 = vrot.lane.b32.xlu0 %v1504, 126
          %v1508 = vpop.permute.xlu0 %1507
          %v1511 = vadd.f32 %v1490, %v1506
          %v1512 = vadd.f32 %v1491, %v1508
          %s1513 = sld [smem:[#allocation6 + $0x48]]
          %v1514 = vstv %s1513
          %v1515 = vmul.f32 %v1514, %v1206
          %v1516 = vmul.f32 %v1514, %v1207
          %v1517 = vmul.f32 %v1514, %v1208
          %v1521 = vrot.slane %v1515, 3
          %v1522 = vrot.slane %v1516, 3
          %v1523 = vsel %vm302, %v1521, %v1522
          %v1524 = vrot.slane %v1517, 3
          %v1525 = vsel %vm302, %v1522, %v1524
          %1526 = vrot.lane.b32.xlu0 %v1523, 126
          %v1527 = vpop.permute.xlu0 %1526
          %1528 = vrot.lane.b32.xlu0 %v1525, 126
          %v1529 = vpop.permute.xlu0 %1528
          %v1532 = vadd.f32 %v1511, %v1527
          %v1533 = vadd.f32 %v1512, %v1529
          %s1534 = sld [smem:[#allocation6 + $0x4f]]
          %v1535 = vstv %s1534
          %v1536 = vmul.f32 %v1535, %v1206
          %v1537 = vmul.f32 %v1535, %v1207
          %v1538 = vmul.f32 %v1535, %v1208
          %v1542 = vrot.slane %v1536, 4
          %v1543 = vrot.slane %v1537, 4
          %v1544 = vsel %vm320, %v1542, %v1543
          %v1545 = vrot.slane %v1538, 4
          %v1546 = vsel %vm320, %v1543, %v1545
          %1547 = vrot.lane.b32.xlu0 %v1544, 126
          %v1548 = vpop.permute.xlu0 %1547
          %1549 = vrot.lane.b32.xlu0 %v1546, 126
          %v1550 = vpop.permute.xlu0 %1549
          %v1553 = vadd.f32 %v1532, %v1548
          %v1554 = vadd.f32 %v1533, %v1550
          %s1555 = sld [smem:[#allocation6 + $0x56]]
          %v1556 = vstv %s1555
          %v1557 = vmul.f32 %v1556, %v1206
          %v1558 = vmul.f32 %v1556, %v1207
          %v1559 = vmul.f32 %v1556, %v1208
          %v1563 = vrot.slane %v1557, 5
          %v1564 = vrot.slane %v1558, 5
          %v1565 = vsel %vm338, %v1563, %v1564
          %v1566 = vrot.slane %v1559, 5
          %v1567 = vsel %vm338, %v1564, %v1566
          %1568 = vrot.lane.b32.xlu0 %v1565, 126
          %v1569 = vpop.permute.xlu0 %1568
          %1570 = vrot.lane.b32.xlu0 %v1567, 126
          %v1571 = vpop.permute.xlu0 %1570
          %v1574 = vadd.f32 %v1553, %v1569
          %v1575 = vadd.f32 %v1554, %v1571
          %s1576 = sld [smem:[#allocation6 + $0x5d]]
          %v1577 = vstv %s1576
          %v1578 = vmul.f32 %v1577, %v1206
          %v1579 = vmul.f32 %v1577, %v1207
          %v1580 = vmul.f32 %v1577, %v1208
          %v1584 = vrot.slane %v1578, 6
          %v1585 = vrot.slane %v1579, 6
          %v1586 = vsel %vm356, %v1584, %v1585
          %v1587 = vrot.slane %v1580, 6
          %v1588 = vsel %vm356, %v1585, %v1587
          %1589 = vrot.lane.b32.xlu0 %v1586, 126
          %v1590 = vpop.permute.xlu0 %1589
          %1591 = vrot.lane.b32.xlu0 %v1588, 126
          %v1592 = vpop.permute.xlu0 %1591
          %v1595 = vadd.f32 %v1574, %v1590
          %v1596 = vadd.f32 %v1575, %v1592
          %s1597 = sld [smem:[#allocation6 + $0x34]]
          %v1598 = vstv %s1597
          %v1599 = vmul.f32 %v1598, %v1206
          %v1600 = vmul.f32 %v1598, %v1207
          %1603 = vrot.lane.b32.xlu0 %v1599, 125
          %v1604 = vpop.permute.xlu0 %1603
          %1605 = vrot.lane.b32.xlu0 %v1600, 125
          %v1606 = vpop.permute.xlu0 %1605
          %v1609 = vadd.f32 %v1595, %v1604
          %v1610 = vadd.f32 %v1596, %v1606
          %s1611 = sld [smem:[#allocation6 + $0x3b]]
          %v1612 = vstv %s1611
          %v1613 = vmul.f32 %v1612, %v1206
          %v1614 = vmul.f32 %v1612, %v1207
          %v1615 = vmul.f32 %v1612, %v1208
          %v1619 = vrot.slane %v1613, 1
          %v1620 = vrot.slane %v1614, 1
          %v1621 = vsel %vm266, %v1619, %v1620
          %v1622 = vrot.slane %v1615, 1
          %v1623 = vsel %vm266, %v1620, %v1622
          %1624 = vrot.lane.b32.xlu0 %v1621, 125
          %v1625 = vpop.permute.xlu0 %1624
          %1626 = vrot.lane.b32.xlu0 %v1623, 125
          %v1627 = vpop.permute.xlu0 %1626
          %v1630 = vadd.f32 %v1609, %v1625
          %v1631 = vadd.f32 %v1610, %v1627
          %s1632 = sld [smem:[#allocation6 + $0x42]]
          %v1633 = vstv %s1632
          %v1634 = vmul.f32 %v1633, %v1206
          %v1635 = vmul.f32 %v1633, %v1207
          %v1636 = vmul.f32 %v1633, %v1208
          %v1640 = vrot.slane %v1634, 2
          %v1641 = vrot.slane %v1635, 2
          %v1642 = vsel %vm284, %v1640, %v1641
          %v1643 = vrot.slane %v1636, 2
          %v1644 = vsel %vm284, %v1641, %v1643
          %1645 = vrot.lane.b32.xlu0 %v1642, 125
          %v1646 = vpop.permute.xlu0 %1645
          %1647 = vrot.lane.b32.xlu0 %v1644, 125
          %v1648 = vpop.permute.xlu0 %1647
          %v1651 = vadd.f32 %v1630, %v1646
          %v1652 = vadd.f32 %v1631, %v1648
          %s1653 = sld [smem:[#allocation6 + $0x49]]
          %v1654 = vstv %s1653
          %v1655 = vmul.f32 %v1654, %v1206
          %v1656 = vmul.f32 %v1654, %v1207
          %v1657 = vmul.f32 %v1654, %v1208
          %v1661 = vrot.slane %v1655, 3
          %v1662 = vrot.slane %v1656, 3
          %v1663 = vsel %vm302, %v1661, %v1662
          %v1664 = vrot.slane %v1657, 3
          %v1665 = vsel %vm302, %v1662, %v1664
          %1666 = vrot.lane.b32.xlu0 %v1663, 125
          %v1667 = vpop.permute.xlu0 %1666
          %1668 = vrot.lane.b32.xlu0 %v1665, 125
          %v1669 = vpop.permute.xlu0 %1668
          %v1672 = vadd.f32 %v1651, %v1667
          %v1673 = vadd.f32 %v1652, %v1669
          %s1674 = sld [smem:[#allocation6 + $0x50]]
          %v1675 = vstv %s1674
          %v1676 = vmul.f32 %v1675, %v1206
          %v1677 = vmul.f32 %v1675, %v1207
          %v1678 = vmul.f32 %v1675, %v1208
          %v1682 = vrot.slane %v1676, 4
          %v1683 = vrot.slane %v1677, 4
          %v1684 = vsel %vm320, %v1682, %v1683
          %v1685 = vrot.slane %v1678, 4
          %v1686 = vsel %vm320, %v1683, %v1685
          %1687 = vrot.lane.b32.xlu0 %v1684, 125
          %v1688 = vpop.permute.xlu0 %1687
          %1689 = vrot.lane.b32.xlu0 %v1686, 125
          %v1690 = vpop.permute.xlu0 %1689
          %v1693 = vadd.f32 %v1672, %v1688
          %v1694 = vadd.f32 %v1673, %v1690
          %s1695 = sld [smem:[#allocation6 + $0x57]]
          %v1696 = vstv %s1695
          %v1697 = vmul.f32 %v1696, %v1206
          %v1698 = vmul.f32 %v1696, %v1207
          %v1699 = vmul.f32 %v1696, %v1208
          %v1703 = vrot.slane %v1697, 5
          %v1704 = vrot.slane %v1698, 5
          %v1705 = vsel %vm338, %v1703, %v1704
          %v1706 = vrot.slane %v1699, 5
          %v1707 = vsel %vm338, %v1704, %v1706
          %1708 = vrot.lane.b32.xlu0 %v1705, 125
          %v1709 = vpop.permute.xlu0 %1708
          %1710 = vrot.lane.b32.xlu0 %v1707, 125
          %v1711 = vpop.permute.xlu0 %1710
          %v1714 = vadd.f32 %v1693, %v1709
          %v1715 = vadd.f32 %v1694, %v1711
          %s1716 = sld [smem:[#allocation6 + $0x5e]]
          %v1717 = vstv %s1716
          %v1718 = vmul.f32 %v1717, %v1206
          %v1719 = vmul.f32 %v1717, %v1207
          %v1720 = vmul.f32 %v1717, %v1208
          %v1724 = vrot.slane %v1718, 6
          %v1725 = vrot.slane %v1719, 6
          %v1726 = vsel %vm356, %v1724, %v1725
          %v1727 = vrot.slane %v1720, 6
          %v1728 = vsel %vm356, %v1725, %v1727
          %1729 = vrot.lane.b32.xlu0 %v1726, 125
          %v1730 = vpop.permute.xlu0 %1729
          %1731 = vrot.lane.b32.xlu0 %v1728, 125
          %v1732 = vpop.permute.xlu0 %1731
          %v1735 = vadd.f32 %v1714, %v1730
          %v1736 = vadd.f32 %v1715, %v1732
          %s1737 = sld [smem:[#allocation6 + $0x35]]
          %v1738 = vstv %s1737
          %v1739 = vmul.f32 %v1738, %v1206
          %v1740 = vmul.f32 %v1738, %v1207
          %1743 = vrot.lane.b32.xlu0 %v1739, 124
          %v1744 = vpop.permute.xlu0 %1743
          %1745 = vrot.lane.b32.xlu0 %v1740, 124
          %v1746 = vpop.permute.xlu0 %1745
          %v1749 = vadd.f32 %v1735, %v1744
          %v1750 = vadd.f32 %v1736, %v1746
          %s1751 = sld [smem:[#allocation6 + $0x3c]]
          %v1752 = vstv %s1751
          %v1753 = vmul.f32 %v1752, %v1206
          %v1754 = vmul.f32 %v1752, %v1207
          %v1755 = vmul.f32 %v1752, %v1208
          %v1759 = vrot.slane %v1753, 1
          %v1760 = vrot.slane %v1754, 1
          %v1761 = vsel %vm266, %v1759, %v1760
          %v1762 = vrot.slane %v1755, 1
          %v1763 = vsel %vm266, %v1760, %v1762
          %1764 = vrot.lane.b32.xlu0 %v1761, 124
          %v1765 = vpop.permute.xlu0 %1764
          %1766 = vrot.lane.b32.xlu0 %v1763, 124
          %v1767 = vpop.permute.xlu0 %1766
          %v1770 = vadd.f32 %v1749, %v1765
          %v1771 = vadd.f32 %v1750, %v1767
          %s1772 = sld [smem:[#allocation6 + $0x43]]
          %v1773 = vstv %s1772
          %v1774 = vmul.f32 %v1773, %v1206
          %v1775 = vmul.f32 %v1773, %v1207
          %v1776 = vmul.f32 %v1773, %v1208
          %v1780 = vrot.slane %v1774, 2
          %v1781 = vrot.slane %v1775, 2
          %v1782 = vsel %vm284, %v1780, %v1781
          %v1783 = vrot.slane %v1776, 2
          %v1784 = vsel %vm284, %v1781, %v1783
          %1785 = vrot.lane.b32.xlu0 %v1782, 124
          %v1786 = vpop.permute.xlu0 %1785
          %1787 = vrot.lane.b32.xlu0 %v1784, 124
          %v1788 = vpop.permute.xlu0 %1787
          %v1791 = vadd.f32 %v1770, %v1786
          %v1792 = vadd.f32 %v1771, %v1788
          %s1793 = sld [smem:[#allocation6 + $0x4a]]
          %v1794 = vstv %s1793
          %v1795 = vmul.f32 %v1794, %v1206
          %v1796 = vmul.f32 %v1794, %v1207
          %v1797 = vmul.f32 %v1794, %v1208
          %v1801 = vrot.slane %v1795, 3
          %v1802 = vrot.slane %v1796, 3
          %v1803 = vsel %vm302, %v1801, %v1802
          %v1804 = vrot.slane %v1797, 3
          %v1805 = vsel %vm302, %v1802, %v1804
          %1806 = vrot.lane.b32.xlu0 %v1803, 124
          %v1807 = vpop.permute.xlu0 %1806
          %1808 = vrot.lane.b32.xlu0 %v1805, 124
          %v1809 = vpop.permute.xlu0 %1808
          %v1812 = vadd.f32 %v1791, %v1807
          %v1813 = vadd.f32 %v1792, %v1809
          %s1814 = sld [smem:[#allocation6 + $0x51]]
          %v1815 = vstv %s1814
          %v1816 = vmul.f32 %v1815, %v1206
          %v1817 = vmul.f32 %v1815, %v1207
          %v1818 = vmul.f32 %v1815, %v1208
          %v1822 = vrot.slane %v1816, 4
          %v1823 = vrot.slane %v1817, 4
          %v1824 = vsel %vm320, %v1822, %v1823
          %v1825 = vrot.slane %v1818, 4
          %v1826 = vsel %vm320, %v1823, %v1825
          %1827 = vrot.lane.b32.xlu0 %v1824, 124
          %v1828 = vpop.permute.xlu0 %1827
          %1829 = vrot.lane.b32.xlu0 %v1826, 124
          %v1830 = vpop.permute.xlu0 %1829
          %v1833 = vadd.f32 %v1812, %v1828
          %v1834 = vadd.f32 %v1813, %v1830
          %s1835 = sld [smem:[#allocation6 + $0x58]]
          %v1836 = vstv %s1835
          %v1837 = vmul.f32 %v1836, %v1206
          %v1838 = vmul.f32 %v1836, %v1207
          %v1839 = vmul.f32 %v1836, %v1208
          %v1843 = vrot.slane %v1837, 5
          %v1844 = vrot.slane %v1838, 5
          %v1845 = vsel %vm338, %v1843, %v1844
          %v1846 = vrot.slane %v1839, 5
          %v1847 = vsel %vm338, %v1844, %v1846
          %1848 = vrot.lane.b32.xlu0 %v1845, 124
          %v1849 = vpop.permute.xlu0 %1848
          %1850 = vrot.lane.b32.xlu0 %v1847, 124
          %v1851 = vpop.permute.xlu0 %1850
          %v1854 = vadd.f32 %v1833, %v1849
          %v1855 = vadd.f32 %v1834, %v1851
          %s1856 = sld [smem:[#allocation6 + $0x5f]]
          %v1857 = vstv %s1856
          %v1858 = vmul.f32 %v1857, %v1206
          %v1859 = vmul.f32 %v1857, %v1207
          %v1860 = vmul.f32 %v1857, %v1208
          %v1864 = vrot.slane %v1858, 6
          %v1865 = vrot.slane %v1859, 6
          %v1866 = vsel %vm356, %v1864, %v1865
          %v1867 = vrot.slane %v1860, 6
          %v1868 = vsel %vm356, %v1865, %v1867
          %1869 = vrot.lane.b32.xlu0 %v1866, 124
          %v1870 = vpop.permute.xlu0 %1869
          %1871 = vrot.lane.b32.xlu0 %v1868, 124
          %v1872 = vpop.permute.xlu0 %1871
          %v1875 = vadd.f32 %v1854, %v1870
          %v1876 = vadd.f32 %v1855, %v1872
          %s1877 = sld [smem:[#allocation6 + $0x36]]
          %v1878 = vstv %s1877
          %v1879 = vmul.f32 %v1878, %v1206
          %v1880 = vmul.f32 %v1878, %v1207
          %1883 = vrot.lane.b32.xlu0 %v1879, 123
          %v1884 = vpop.permute.xlu0 %1883
          %1885 = vrot.lane.b32.xlu0 %v1880, 123
          %v1886 = vpop.permute.xlu0 %1885
          %v1889 = vadd.f32 %v1875, %v1884
          %v1890 = vadd.f32 %v1876, %v1886
          %s1891 = sld [smem:[#allocation6 + $0x3d]]
          %v1892 = vstv %s1891
          %v1893 = vmul.f32 %v1892, %v1206
          %v1894 = vmul.f32 %v1892, %v1207
          %v1895 = vmul.f32 %v1892, %v1208
          %v1899 = vrot.slane %v1893, 1
          %v1900 = vrot.slane %v1894, 1
          %v1901 = vsel %vm266, %v1899, %v1900
          %v1902 = vrot.slane %v1895, 1
          %v1903 = vsel %vm266, %v1900, %v1902
          %1904 = vrot.lane.b32.xlu0 %v1901, 123
          %v1905 = vpop.permute.xlu0 %1904
          %1906 = vrot.lane.b32.xlu0 %v1903, 123
          %v1907 = vpop.permute.xlu0 %1906
          %v1910 = vadd.f32 %v1889, %v1905
          %v1911 = vadd.f32 %v1890, %v1907
          %s1912 = sld [smem:[#allocation6 + $0x44]]
          %v1913 = vstv %s1912
          %v1914 = vmul.f32 %v1913, %v1206
          %v1915 = vmul.f32 %v1913, %v1207
          %v1916 = vmul.f32 %v1913, %v1208
          %v1920 = vrot.slane %v1914, 2
          %v1921 = vrot.slane %v1915, 2
          %v1922 = vsel %vm284, %v1920, %v1921
          %v1923 = vrot.slane %v1916, 2
          %v1924 = vsel %vm284, %v1921, %v1923
          %1925 = vrot.lane.b32.xlu0 %v1922, 123
          %v1926 = vpop.permute.xlu0 %1925
          %1927 = vrot.lane.b32.xlu0 %v1924, 123
          %v1928 = vpop.permute.xlu0 %1927
          %v1931 = vadd.f32 %v1910, %v1926
          %v1932 = vadd.f32 %v1911, %v1928
          %s1933 = sld [smem:[#allocation6 + $0x4b]]
          %v1934 = vstv %s1933
          %v1935 = vmul.f32 %v1934, %v1206
          %v1936 = vmul.f32 %v1934, %v1207
          %v1937 = vmul.f32 %v1934, %v1208
          %v1941 = vrot.slane %v1935, 3
          %v1942 = vrot.slane %v1936, 3
          %v1943 = vsel %vm302, %v1941, %v1942
          %v1944 = vrot.slane %v1937, 3
          %v1945 = vsel %vm302, %v1942, %v1944
          %1946 = vrot.lane.b32.xlu0 %v1943, 123
          %v1947 = vpop.permute.xlu0 %1946
          %1948 = vrot.lane.b32.xlu0 %v1945, 123
          %v1949 = vpop.permute.xlu0 %1948
          %v1952 = vadd.f32 %v1931, %v1947
          %v1953 = vadd.f32 %v1932, %v1949
          %s1954 = sld [smem:[#allocation6 + $0x52]]
          %v1955 = vstv %s1954
          %v1956 = vmul.f32 %v1955, %v1206
          %v1957 = vmul.f32 %v1955, %v1207
          %v1958 = vmul.f32 %v1955, %v1208
          %v1962 = vrot.slane %v1956, 4
          %v1963 = vrot.slane %v1957, 4
          %v1964 = vsel %vm320, %v1962, %v1963
          %v1965 = vrot.slane %v1958, 4
          %v1966 = vsel %vm320, %v1963, %v1965
          %1967 = vrot.lane.b32.xlu0 %v1964, 123
          %v1968 = vpop.permute.xlu0 %1967
          %1969 = vrot.lane.b32.xlu0 %v1966, 123
          %v1970 = vpop.permute.xlu0 %1969
          %v1973 = vadd.f32 %v1952, %v1968
          %v1974 = vadd.f32 %v1953, %v1970
          %s1975 = sld [smem:[#allocation6 + $0x59]]
          %v1976 = vstv %s1975
          %v1977 = vmul.f32 %v1976, %v1206
          %v1978 = vmul.f32 %v1976, %v1207
          %v1979 = vmul.f32 %v1976, %v1208
          %v1983 = vrot.slane %v1977, 5
          %v1984 = vrot.slane %v1978, 5
          %v1985 = vsel %vm338, %v1983, %v1984
          %v1986 = vrot.slane %v1979, 5
          %v1987 = vsel %vm338, %v1984, %v1986
          %1988 = vrot.lane.b32.xlu0 %v1985, 123
          %v1989 = vpop.permute.xlu0 %1988
          %1990 = vrot.lane.b32.xlu0 %v1987, 123
          %v1991 = vpop.permute.xlu0 %1990
          %v1994 = vadd.f32 %v1973, %v1989
          %v1995 = vadd.f32 %v1974, %v1991
          %s1996 = sld [smem:[#allocation6 + $0x60]]
          %v1997 = vstv %s1996
          %v1998 = vmul.f32 %v1997, %v1206
          %v1999 = vmul.f32 %v1997, %v1207
          %v2000 = vmul.f32 %v1997, %v1208
          %v2004 = vrot.slane %v1998, 6
          %v2005 = vrot.slane %v1999, 6
          %v2006 = vsel %vm356, %v2004, %v2005
          %v2007 = vrot.slane %v2000, 6
          %v2008 = vsel %vm356, %v2005, %v2007
          %2009 = vrot.lane.b32.xlu0 %v2006, 123
          %v2010 = vpop.permute.xlu0 %2009
          %2011 = vrot.lane.b32.xlu0 %v2008, 123
          %v2012 = vpop.permute.xlu0 %2011
          %v2015 = vadd.f32 %v1994, %v2010
          %v2016 = vadd.f32 %v1995, %v2012
          %s2017 = sld [smem:[#allocation6 + $0x37]]
          %v2018 = vstv %s2017
          %v2019 = vmul.f32 %v2018, %v1206
          %v2020 = vmul.f32 %v2018, %v1207
          %2023 = vrot.lane.b32.xlu0 %v2019, 122
          %v2024 = vpop.permute.xlu0 %2023
          %2025 = vrot.lane.b32.xlu0 %v2020, 122
          %v2026 = vpop.permute.xlu0 %2025
          %v2029 = vadd.f32 %v2015, %v2024
          %v2030 = vadd.f32 %v2016, %v2026
          %s2031 = sld [smem:[#allocation6 + $0x3e]]
          %v2032 = vstv %s2031
          %v2033 = vmul.f32 %v2032, %v1206
          %v2034 = vmul.f32 %v2032, %v1207
          %v2035 = vmul.f32 %v2032, %v1208
          %v2039 = vrot.slane %v2033, 1
          %v2040 = vrot.slane %v2034, 1
          %v2041 = vsel %vm266, %v2039, %v2040
          %v2042 = vrot.slane %v2035, 1
          %v2043 = vsel %vm266, %v2040, %v2042
          %2044 = vrot.lane.b32.xlu0 %v2041, 122
          %v2045 = vpop.permute.xlu0 %2044
          %2046 = vrot.lane.b32.xlu0 %v2043, 122
          %v2047 = vpop.permute.xlu0 %2046
          %v2050 = vadd.f32 %v2029, %v2045
          %v2051 = vadd.f32 %v2030, %v2047
          %s2052 = sld [smem:[#allocation6 + $0x45]]
          %v2053 = vstv %s2052
          %v2054 = vmul.f32 %v2053, %v1206
          %v2055 = vmul.f32 %v2053, %v1207
          %v2056 = vmul.f32 %v2053, %v1208
          %v2060 = vrot.slane %v2054, 2
          %v2061 = vrot.slane %v2055, 2
          %v2062 = vsel %vm284, %v2060, %v2061
          %v2063 = vrot.slane %v2056, 2
          %v2064 = vsel %vm284, %v2061, %v2063
          %2065 = vrot.lane.b32.xlu0 %v2062, 122
          %v2066 = vpop.permute.xlu0 %2065
          %2067 = vrot.lane.b32.xlu0 %v2064, 122
          %v2068 = vpop.permute.xlu0 %2067
          %v2071 = vadd.f32 %v2050, %v2066
          %v2072 = vadd.f32 %v2051, %v2068
          %s2073 = sld [smem:[#allocation6 + $0x4c]]
          %v2074 = vstv %s2073
          %v2075 = vmul.f32 %v2074, %v1206
          %v2076 = vmul.f32 %v2074, %v1207
          %v2077 = vmul.f32 %v2074, %v1208
          %v2081 = vrot.slane %v2075, 3
          %v2082 = vrot.slane %v2076, 3
          %v2083 = vsel %vm302, %v2081, %v2082
          %v2084 = vrot.slane %v2077, 3
          %v2085 = vsel %vm302, %v2082, %v2084
          %2086 = vrot.lane.b32.xlu0 %v2083, 122
          %v2087 = vpop.permute.xlu0 %2086
          %2088 = vrot.lane.b32.xlu0 %v2085, 122
          %v2089 = vpop.permute.xlu0 %2088
          %v2092 = vadd.f32 %v2071, %v2087
          %v2093 = vadd.f32 %v2072, %v2089
          %s2094 = sld [smem:[#allocation6 + $0x53]]
          %v2095 = vstv %s2094
          %v2096 = vmul.f32 %v2095, %v1206
          %v2097 = vmul.f32 %v2095, %v1207
          %v2098 = vmul.f32 %v2095, %v1208
          %v2102 = vrot.slane %v2096, 4
          %v2103 = vrot.slane %v2097, 4
          %v2104 = vsel %vm320, %v2102, %v2103
          %v2105 = vrot.slane %v2098, 4
          %v2106 = vsel %vm320, %v2103, %v2105
          %2107 = vrot.lane.b32.xlu0 %v2104, 122
          %v2108 = vpop.permute.xlu0 %2107
          %2109 = vrot.lane.b32.xlu0 %v2106, 122
          %v2110 = vpop.permute.xlu0 %2109
          %v2113 = vadd.f32 %v2092, %v2108
          %v2114 = vadd.f32 %v2093, %v2110
          %s2115 = sld [smem:[#allocation6 + $0x5a]]
          %v2116 = vstv %s2115
          %v2117 = vmul.f32 %v2116, %v1206
          %v2118 = vmul.f32 %v2116, %v1207
          %v2119 = vmul.f32 %v2116, %v1208
          %v2123 = vrot.slane %v2117, 5
          %v2124 = vrot.slane %v2118, 5
          %v2125 = vsel %vm338, %v2123, %v2124
          %v2126 = vrot.slane %v2119, 5
          %v2127 = vsel %vm338, %v2124, %v2126
          %2128 = vrot.lane.b32.xlu0 %v2125, 122
          %v2129 = vpop.permute.xlu0 %2128
          %2130 = vrot.lane.b32.xlu0 %v2127, 122
          %v2131 = vpop.permute.xlu0 %2130
          %v2134 = vadd.f32 %v2113, %v2129
          %v2135 = vadd.f32 %v2114, %v2131
          %s2136 = sld [smem:[#allocation6 + $0x61]]
          %v2137 = vstv %s2136
          %v2138 = vmul.f32 %v2137, %v1206
          %v2139 = vmul.f32 %v2137, %v1207
          %v2140 = vmul.f32 %v2137, %v1208
          %v2144 = vrot.slane %v2138, 6
          %v2145 = vrot.slane %v2139, 6
          %v2146 = vsel %vm356, %v2144, %v2145
          %v2147 = vrot.slane %v2140, 6
          %v2148 = vsel %vm356, %v2145, %v2147
          %2149 = vrot.lane.b32.xlu0 %v2146, 122
          %v2150 = vpop.permute.xlu0 %2149
          %2151 = vrot.lane.b32.xlu0 %v2148, 122
          %v2152 = vpop.permute.xlu0 %2151
          %v2155 = vadd.f32 %v2134, %v2150
          %v2156 = vadd.f32 %v2135, %v2152
          %v2157 = vxor.u32 %v2155, 2147483648
          %v2158 = vxor.u32 %v2156, 2147483648
          %v2159 = vmul.f32 %v2157, 1.442695
          %v2160 = vpow.pop %v2159
          %v2161 = vmul.f32 %v2158, 1.442695
          %v2162 = vpow.pop %v2161
          %v2163 = vadd.f32 %v2160, 1.0
          %v2164 = vadd.f32 %v2162, 1.0
          %v2165 = vrcp.pop %v2163
          %v2166 = vmul.f32 1.0, %v2165
          %v2167 = vrcp.pop %v2164
          %v2168 = vmul.f32 1.0, %v2167
          %2169 = vst.msk [vmem:[%s156] sm:$0xff] %vm194, %v2166
          %2170 = vst.msk [vmem:[%s156 + $0x8] sm:$0xff] %vm194, %v2168
        $region36: #{tpu_custom_call.1} parent=23 // pred_fallthru
          _
        %s2171 = sand.u32 %s71, 1
        %s2172 = scalar_lea.sflag [#allocation9], %s2171
        %s2173 = sand.u32 %s71, 1
        %s2174 = smul.addr %s2173, 16
        %s2175 = scalar_lea.vmem [#allocation10], %s2174
        // Predicated region
        $region37: #{tpu_custom_call.1} parent=23 // pred_check
          %p2176 = pneg %p81
        $region38: #{tpu_custom_call.1} parent=23 // pred_check_branch
          %2178 = sbr.rel (%p2176) target = $region40
        $region39: #{tpu_custom_call.1} parent=23 // pred_region
          %s2180 = ssub.s32 256, 256
          %2181 = vsyncadd %s2172, %s2180
          %s2182 = smul.addr %s27, 2
          %s2183 = smul.addr %s2182, 128
          %s2184 = scalar_lea.hbm %s2, %s2183
          %s2185 = sshll.u32 %s2175, 4
          %s2186 = int_to_ptr.vmem [resolvable:$true] %s2185
          %2191 = dma.vmem_to_hbm [thread:$0]  %s2186, 256, %s2184, %s2172, 128, 128, 8
        $region40: #{tpu_custom_call.1} parent=23 // pred_fallthru
          _
      $region24: #{tpu_custom_call.1} parent=5 // pred_fallthru
        _
      %p2192 = scmp.le.s32.totalorder 2, %s18
      // Predicated region
      $region41: #{tpu_custom_call.1} parent=5 // pred_check
        %p2193 = pneg %p2192
      $region42: #{tpu_custom_call.1} parent=5 // pred_check_branch
        %2195 = sbr.rel (%p2193) target = $region44
      $region43: #{tpu_custom_call.1} parent=5 // pred_region
        %s2196 = ssub.s32 %s18, 2
        // Predicated region
        $region45: #{tpu_custom_call.1} parent=43 // pred_check
          %p2197 = pneg %p87
        $region46: #{tpu_custom_call.1} parent=43 // pred_check_branch
          %2199 = sbr.rel (%p2197) target = $region48
        $region47: #{tpu_custom_call.1} parent=43 // pred_region
          %s2200 = sand.u32 %s72, 1
          %s2201 = scalar_lea.sflag [#allocation9], %s2200
          %s2202 = sand.u32 %s72, 1
          %s2203 = smul.addr %s2202, 16
          %s2204 = scalar_lea.vmem [#allocation10], %s2203
          %2205 = dma.done %s2201, 256
        $region48: #{tpu_custom_call.1} parent=43 // pred_fallthru
          _
      $region44: #{tpu_custom_call.1} parent=5 // pred_fallthru
        _
    $region6: #{tpu_custom_call.1} parent=1 // loop_footer
      %s22 = sadd.s32 1, %s18
    $region7: #{tpu_custom_call.1} parent=1 // loop_footer_branch
      %17 = sbr.rel target = $region3
    $region8: #{tpu_custom_call.1} parent=1 // loop_exit
      _
    %2206 = vsyncpa [#allocation8], 1
    %s2207 = scalar_lea.sflag [#allocation8], 1
    %2208 = vsyncpa %s2207, 1
    %2209 = vsyncpa [#allocation9], 1
    %s2210 = scalar_lea.sflag [#allocation9], 1
    %2211 = vsyncpa %s2210, 1

</llo_original>
